<compile_context>
chip_gen: v6e
topology: v6e:2x2x1
jax: 0.10.0
libtpu: 0.0.40
codegen_flags: <defaults>
</compile_context>

<pallas_src>
import math

import jax
import jax.numpy as jnp
from jax.experimental import pallas as pl
from jax.experimental.pallas import tpu as pltpu

ALPHA = 0.01        # leaky_relu negative slope (nonlinearity_param)
TILE_B = 512        # batch rows per grid step; tiny VMEM footprint on all gens
LANE = 128          # TPU lane width; output padded to a multiple of this
NEG_BIG = -1e30     # bias for padded logits -> softmax probability exactly 0


def _leaky_relu(x, alpha=ALPHA):
    return jnp.where(x > 0, x, alpha * x)


def _round_up(n, m):
    return pl.cdiv(n, m) * m


def mlp_kernel(x_ref, w1_ref, b1_ref, w2_ref, b2_ref, w3_ref, b3_ref, o_ref):
    """One batch tile through the whole network (weights resident in VMEM)."""
    # first_layer_nonlinearity (f32)
    h = _leaky_relu(x_ref[...])

    # Linear(in_dim, hidden) + LeakyReLU   (bf16 MXU inputs, f32 accumulate)
    h = jnp.dot(h.astype(jnp.bfloat16), w1_ref[...],
                preferred_element_type=jnp.float32) + b1_ref[...]
    h = _leaky_relu(h)

    # Linear(hidden, hidden) + LeakyReLU
    h = jnp.dot(h.astype(jnp.bfloat16), w2_ref[...],
                preferred_element_type=jnp.float32) + b2_ref[...]
    h = _leaky_relu(h)

    # Linear(hidden, out_pad): columns >= out_size carry bias -1e30 so the
    # 128-lane softmax assigns them zero probability.
    logits = jnp.dot(h.astype(jnp.bfloat16), w3_ref[...],
                     preferred_element_type=jnp.float32) + b3_ref[...]

    # Softmax(dim=1) over the padded lane dimension (f32, max-subtracted)
    m = jnp.max(logits, axis=-1, keepdims=True)
    e = jnp.exp(logits - m)
    denom = jnp.sum(e, axis=-1, keepdims=True)
    o_ref[...] = (e * pl.reciprocal(denom, approx=True)).astype(o_ref.dtype)


def simple_regression_net_forward(x, params, tile_b=TILE_B):
    """params = (w1, b1, w2, b2, w3, b3); weights are (in, out) f32, biases (1, out) f32."""
    w1, b1, w2, b2, w3, b3 = params
    B, in_dim = x.shape
    hidden = w1.shape[1]
    out_size = w3.shape[1]

    # ---- lane-dense output: pad out_size up to a multiple of 128 lanes ------
    out_pad = _round_up(out_size, LANE)
    w3p = jnp.zeros((hidden, out_pad), w3.dtype).at[:, :out_size].set(w3)
    b3p = jnp.full((1, out_pad), NEG_BIG, jnp.float32).at[:, :out_size].set(b3)

    # bf16 MXU inputs (accumulation stays f32 inside the kernel)
    w1b = w1.astype(jnp.bfloat16)
    w2b = w2.astype(jnp.bfloat16)
    w3b = w3p.astype(jnp.bfloat16)

    # ---- batch tiling: pad B up to a multiple of the tile --------------------
    tile_b = min(tile_b, _round_up(B, 8))
    b_pad = _round_up(B, tile_b)
    if b_pad != B:
        x = jnp.pad(x, ((0, b_pad - B), (0, 0)))
    grid = (b_pad // tile_b,)

    resident = lambda i: (0, 0)   # weights/biases: same block every step (stay in VMEM)
    grid_spec = pltpu.PrefetchScalarGridSpec(
        num_scalar_prefetch=0,
        grid=grid,
        in_specs=[
            pl.BlockSpec((tile_b, in_dim), lambda i: (i, 0)),   # x tile (pipelined)
            pl.BlockSpec((in_dim, hidden), resident),
            pl.BlockSpec((1, hidden), resident),
            pl.BlockSpec((hidden, hidden), resident),
            pl.BlockSpec((1, hidden), resident),
            pl.BlockSpec((hidden, out_pad), resident),
            pl.BlockSpec((1, out_pad), resident),
        ],
        out_specs=pl.BlockSpec((tile_b, out_pad), lambda i: (i, 0)),
    )

    flops = 2 * b_pad * (in_dim * hidden + hidden * hidden + hidden * out_pad)
    bytes_accessed = (b_pad * in_dim * 4 + b_pad * out_pad * 4
                      + (in_dim * hidden + hidden * hidden + hidden * out_pad) * 2
                      + (2 * hidden + out_pad) * 4)
    cost = pl.CostEstimate(flops=flops,
                           transcendentals=b_pad * out_pad,
                           bytes_accessed=bytes_accessed)

    out = pl.pallas_call(
        mlp_kernel,
        out_shape=jax.ShapeDtypeStruct((b_pad, out_pad), jnp.float32),
        grid_spec=grid_spec,
        compiler_params=pltpu.CompilerParams(
            dimension_semantics=("parallel",)),
        cost_estimate=cost,
    )(x, w1b, b1, w2b, b2, w3b, b3p)

    return out[:B, :out_size]


# ---------------- deterministic parameter initialization ----------------

def _linear_init(key, fan_in, fan_out):
    """PyTorch nn.Linear default: U(-1/sqrt(fan_in), 1/sqrt(fan_in))."""
    kw, kb = jax.random.split(key)
    bound = 1.0 / math.sqrt(fan_in)
    w = jax.random.uniform(kw, (fan_in, fan_out), jnp.float32, -bound, bound)
    b = jax.random.uniform(kb, (1, fan_out), jnp.float32, -bound, bound)
    return w, b


def _kaiming_uniform_custom(key, fan_in, fan_out, a=ALPHA):
    """apply_init_w 'kaiming_uniform_custom': gain/sqrt(w.shape[0]*w.shape[1])."""
    gain = math.sqrt(2.0 / (1.0 + a * a))          # calculate_gain('leaky_relu', a)
    fan = fan_in * fan_out                         # w.shape[0] * w.shape[1]
    std = gain / math.sqrt(fan)
    bound = math.sqrt(3.0) * std
    return jax.random.uniform(key, (fan_in, fan_out), jnp.float32, -bound, bound)


def init_params(key, in_dim, hidden_dim, out_size):
    k1, k2, k2b, k3 = jax.random.split(key, 4)
    w1, b1 = _linear_init(k1, in_dim, hidden_dim)
    # hidden->hidden layer uses apply_init_w on the weight (bias keeps default init)
    _, b2 = _linear_init(k2b, hidden_dim, hidden_dim)
    w2 = _kaiming_uniform_custom(k2, hidden_dim, hidden_dim)
    w3, b3 = _linear_init(k3, hidden_dim, out_size)
    return w1, b1, w2, b2, w3, b3


# ---------------- references ----------------

def reference_forward_f32(x, params):
    """Pure-f32 reference (module semantics)."""
    w1, b1, w2, b2, w3, b3 = params
    h = _leaky_relu(x)
    h = _leaky_relu(h @ w1 + b1)
    h = _leaky_relu(h @ w2 + b2)
    return jax.nn.softmax(h @ w3 + b3, axis=1)


def reference_forward_mixed(x, params):
    """Mirrors the kernel numerics: bf16 matmul inputs, f32 accumulate/elementwise."""
    w1, b1, w2, b2, w3, b3 = params

    def lin(h, w, b):
        return jnp.dot(h.astype(jnp.bfloat16), w.astype(jnp.bfloat16),
                       preferred_element_type=jnp.float32) + b

    h = _leaky_relu(x)
    h = _leaky_relu(lin(h, w1, b1))
    h = _leaky_relu(lin(h, w2, b2))
    return jax.nn.softmax(lin(h, w3, b3), axis=1)


if __name__ == "__main__":
    # B deliberately not a multiple of 8/TILE_B to exercise the padding path.
    B, IN_DIM, HIDDEN, OUT = 300, 16, 32, 8

    root = jax.random.PRNGKey(0)
    kx, kp = jax.random.split(root)
    x = jax.random.normal(kx, (B, IN_DIM), jnp.float32)
    params = init_params(kp, IN_DIM, HIDDEN, OUT)

    out = simple_regression_net_forward(x, params)
    out = jax.block_until_ready(out)
    assert out.shape == (B, OUT)

    # Matches the kernel's mixed-precision numerics closely.
    ref_mixed = reference_forward_mixed(x, params)
    assert jnp.allclose(out, ref_mixed, atol=5e-3, rtol=0.0)

    # Close to the pure-f32 module forward (bf16 matmul inputs cost ~1e-2 abs).
    ref_f32 = reference_forward_f32(x, params)
    assert jnp.allclose(out, ref_f32, atol=3e-2, rtol=0.0)

    # Softmax rows sum to 1 (approx reciprocal => slightly loosened tolerance).
    assert jnp.allclose(jnp.sum(out, axis=1), jnp.ones((B,)), atol=5e-3)

    print("KERNEL_OK")
</pallas_src>

<mosaic_0001>
module attributes {stable_mosaic.version = 11 : i64} {
  func.func @mlp_kernel(%arg0: i32, %arg1: memref<304x16xf32, #tpu.memory_space<vmem>>, %arg2: memref<16x32xbf16, #tpu.memory_space<vmem>>, %arg3: memref<1x32xf32, #tpu.memory_space<vmem>>, %arg4: memref<32x32xbf16, #tpu.memory_space<vmem>>, %arg5: memref<1x32xf32, #tpu.memory_space<vmem>>, %arg6: memref<32x128xbf16, #tpu.memory_space<vmem>>, %arg7: memref<1x128xf32, #tpu.memory_space<vmem>>, %arg8: memref<304x128xf32, #tpu.memory_space<vmem>>) attributes {dimension_semantics = [#tpu.dimension_semantics<parallel>], iteration_bounds = array<i64: 1>, scalar_prefetch = 0 : i64, scratch_operands = 0 : i64, tpu.core_type = #tpu.core_type<tc>, window_params = [{transform_indices = @transform_0, window_bounds = array<i64: 304, 16>}, {pipeline_mode = #tpu.pipeline_mode<synchronous>, transform_indices = @transform_1, window_bounds = array<i64: 16, 32>}, {pipeline_mode = #tpu.pipeline_mode<synchronous>, transform_indices = @transform_2, window_bounds = array<i64: 1, 32>}, {pipeline_mode = #tpu.pipeline_mode<synchronous>, transform_indices = @transform_3, window_bounds = array<i64: 32, 32>}, {pipeline_mode = #tpu.pipeline_mode<synchronous>, transform_indices = @transform_4, window_bounds = array<i64: 1, 32>}, {pipeline_mode = #tpu.pipeline_mode<synchronous>, transform_indices = @transform_5, window_bounds = array<i64: 32, 128>}, {pipeline_mode = #tpu.pipeline_mode<synchronous>, transform_indices = @transform_6, window_bounds = array<i64: 1, 128>}, {transform_indices = @transform_7, window_bounds = array<i64: 304, 128>}]} {
    %c0 = arith.constant 0 : index
    %c0_0 = arith.constant 0 : index
    %0 = vector.load %arg1[%c0, %c0_0] : memref<304x16xf32, #tpu.memory_space<vmem>>, vector<304x16xf32>
    %cst = arith.constant 0.000000e+00 : f32
    %1 = vector.broadcast %cst : f32 to vector<304x16xf32>
    %2 = arith.cmpf ogt, %0, %1 : vector<304x16xf32>
    %cst_1 = arith.constant 0.00999999977 : f32
    %3 = vector.broadcast %cst_1 : f32 to vector<304x16xf32>
    %4 = arith.mulf %3, %0 : vector<304x16xf32>
    %5 = arith.select %2, %0, %4 : vector<304x16xi1>, vector<304x16xf32>
    %6 = arith.truncf %5 : vector<304x16xf32> to vector<304x16xbf16>
    %c0_2 = arith.constant 0 : index
    %c0_3 = arith.constant 0 : index
    %7 = vector.load %arg2[%c0_2, %c0_3] : memref<16x32xbf16, #tpu.memory_space<vmem>>, vector<16x32xbf16>
    %cst_4 = arith.constant dense<0.000000e+00> : vector<304x32xf32>
    %8 = tpu.matmul %6, %7, %cst_4 {dimension_numbers = #tpu.dot_dimension_numbers<[1], [0], [0], [1], [0, 0, 1, 1], [], []>} : vector<304x16xbf16>, vector<16x32xbf16>, vector<304x32xf32> -> vector<304x32xf32>
    %c0_5 = arith.constant 0 : index
    %c0_6 = arith.constant 0 : index
    %9 = vector.load %arg3[%c0_5, %c0_6] : memref<1x32xf32, #tpu.memory_space<vmem>>, vector<1x32xf32>
    %10 = vector.broadcast %9 : vector<1x32xf32> to vector<304x32xf32>
    %11 = arith.addf %8, %10 : vector<304x32xf32>
    %cst_7 = arith.constant 0.000000e+00 : f32
    %12 = vector.broadcast %cst_7 : f32 to vector<304x32xf32>
    %13 = arith.cmpf ogt, %11, %12 : vector<304x32xf32>
    %cst_8 = arith.constant 0.00999999977 : f32
    %14 = vector.broadcast %cst_8 : f32 to vector<304x32xf32>
    %15 = arith.mulf %14, %11 : vector<304x32xf32>
    %16 = arith.select %13, %11, %15 : vector<304x32xi1>, vector<304x32xf32>
    %17 = arith.truncf %16 : vector<304x32xf32> to vector<304x32xbf16>
    %c0_9 = arith.constant 0 : index
    %c0_10 = arith.constant 0 : index
    %18 = vector.load %arg4[%c0_9, %c0_10] : memref<32x32xbf16, #tpu.memory_space<vmem>>, vector<32x32xbf16>
    %cst_11 = arith.constant dense<0.000000e+00> : vector<304x32xf32>
    %19 = tpu.matmul %17, %18, %cst_11 {dimension_numbers = #tpu.dot_dimension_numbers<[1], [0], [0], [1], [0, 0, 1, 1], [], []>} : vector<304x32xbf16>, vector<32x32xbf16>, vector<304x32xf32> -> vector<304x32xf32>
    %c0_12 = arith.constant 0 : index
    %c0_13 = arith.constant 0 : index
    %20 = vector.load %arg5[%c0_12, %c0_13] : memref<1x32xf32, #tpu.memory_space<vmem>>, vector<1x32xf32>
    %21 = vector.broadcast %20 : vector<1x32xf32> to vector<304x32xf32>
    %22 = arith.addf %19, %21 : vector<304x32xf32>
    %cst_14 = arith.constant 0.000000e+00 : f32
    %23 = vector.broadcast %cst_14 : f32 to vector<304x32xf32>
    %24 = arith.cmpf ogt, %22, %23 : vector<304x32xf32>
    %cst_15 = arith.constant 0.00999999977 : f32
    %25 = vector.broadcast %cst_15 : f32 to vector<304x32xf32>
    %26 = arith.mulf %25, %22 : vector<304x32xf32>
    %27 = arith.select %24, %22, %26 : vector<304x32xi1>, vector<304x32xf32>
    %28 = arith.truncf %27 : vector<304x32xf32> to vector<304x32xbf16>
    %c0_16 = arith.constant 0 : index
    %c0_17 = arith.constant 0 : index
    %29 = vector.load %arg6[%c0_16, %c0_17] : memref<32x128xbf16, #tpu.memory_space<vmem>>, vector<32x128xbf16>
    %cst_18 = arith.constant dense<0.000000e+00> : vector<304x128xf32>
    %30 = tpu.matmul %28, %29, %cst_18 {dimension_numbers = #tpu.dot_dimension_numbers<[1], [0], [0], [1], [0, 0, 1, 1], [], []>} : vector<304x32xbf16>, vector<32x128xbf16>, vector<304x128xf32> -> vector<304x128xf32>
    %c0_19 = arith.constant 0 : index
    %c0_20 = arith.constant 0 : index
    %31 = vector.load %arg7[%c0_19, %c0_20] : memref<1x128xf32, #tpu.memory_space<vmem>>, vector<1x128xf32>
    %32 = vector.broadcast %31 : vector<1x128xf32> to vector<304x128xf32>
    %33 = arith.addf %30, %32 : vector<304x128xf32>
    %cst_21 = arith.constant dense<0xFF800000> : vector<304xf32>
    %34 = vector.multi_reduction <maximumf>, %33, %cst_21 [1] : vector<304x128xf32> to vector<304xf32>
    %35 = vector.shape_cast %34 : vector<304xf32> to vector<304x1xf32>
    %36 = vector.broadcast %35 : vector<304x1xf32> to vector<304x128xf32>
    %37 = arith.subf %33, %36 : vector<304x128xf32>
    %38 = math.exp %37 : vector<304x128xf32>
    %cst_22 = arith.constant dense<0.000000e+00> : vector<304xf32>
    %39 = vector.multi_reduction <add>, %38, %cst_22 [1] : vector<304x128xf32> to vector<304xf32>
    %40 = vector.shape_cast %39 : vector<304xf32> to vector<304x1xf32>
    %41 = tpu.reciprocal %40 {approx = true} : vector<304x1xf32> -> vector<304x1xf32>
    %42 = vector.broadcast %41 : vector<304x1xf32> to vector<304x128xf32>
    %43 = arith.mulf %38, %42 : vector<304x128xf32>
    %c0_23 = arith.constant 0 : index
    %c0_24 = arith.constant 0 : index
    %44 = vector.load %arg8[%c0_23, %c0_24] : memref<304x128xf32, #tpu.memory_space<vmem>>, vector<304x128xf32>
    tpu.vector_store %arg8[%c0_23, %c0_24], %43 {strides = array<i32>} : memref<304x128xf32, #tpu.memory_space<vmem>>, vector<304x128xf32>,
    return
  }
  func.func @transform_0(%arg0: i32) -> (i32, i32) {
    %c0_i32 = arith.constant 0 : i32
    %c0_i32_0 = arith.constant 0 : i32
    return %arg0, %c0_i32 : i32, i32
  }
  func.func @transform_1(%arg0: i32) -> (i32, i32) {
    %c0_i32 = arith.constant 0 : i32
    %c0_i32_0 = arith.constant 0 : i32
    %c0_i32_1 = arith.constant 0 : i32
    return %c0_i32, %c0_i32_0 : i32, i32
  }
  func.func @transform_2(%arg0: i32) -> (i32, i32) {
    %c0_i32 = arith.constant 0 : i32
    %c0_i32_0 = arith.constant 0 : i32
    %c0_i32_1 = arith.constant 0 : i32
    return %c0_i32, %c0_i32_0 : i32, i32
  }
  func.func @transform_3(%arg0: i32) -> (i32, i32) {
    %c0_i32 = arith.constant 0 : i32
    %c0_i32_0 = arith.constant 0 : i32
    %c0_i32_1 = arith.constant 0 : i32
    return %c0_i32, %c0_i32_0 : i32, i32
  }
  func.func @transform_4(%arg0: i32) -> (i32, i32) {
    %c0_i32 = arith.constant 0 : i32
    %c0_i32_0 = arith.constant 0 : i32
    %c0_i32_1 = arith.constant 0 : i32
    return %c0_i32, %c0_i32_0 : i32, i32
  }
  func.func @transform_5(%arg0: i32) -> (i32, i32) {
    %c0_i32 = arith.constant 0 : i32
    %c0_i32_0 = arith.constant 0 : i32
    %c0_i32_1 = arith.constant 0 : i32
    return %c0_i32, %c0_i32_0 : i32, i32
  }
  func.func @transform_6(%arg0: i32) -> (i32, i32) {
    %c0_i32 = arith.constant 0 : i32
    %c0_i32_0 = arith.constant 0 : i32
    %c0_i32_1 = arith.constant 0 : i32
    return %c0_i32, %c0_i32_0 : i32, i32
  }
  func.func @transform_7(%arg0: i32) -> (i32, i32) {
    %c0_i32 = arith.constant 0 : i32
    %c0_i32_0 = arith.constant 0 : i32
    return %arg0, %c0_i32 : i32, i32
  }
}

</mosaic_0001>

<llo_original>
// kernel: tpu_custom_call.1
$region0: #{tpu_custom_call.1}
  #allocation0 [shape = 'u32[]', space=smem, size = 0x4, offset = 0x4, fixed_abs, tag = 'smem constant byte address 0x4 - core index']
  #allocation1 [shape = 'u32[144,128]{1,0:T(1,128)}', space=vmem, size = 0x12000, scoped, tag = 'internal scratch']
  %s0 = inlined_call_operand.vmem [shape: f32[304,16], index: 0, kind: input, shape index: {}]
  %s1 = inlined_call_operand.vmem [shape: bf16[16,32], index: 1, kind: input, shape index: {}]
  %s2 = inlined_call_operand.vmem [shape: f32[1,32], index: 2, kind: input, shape index: {}]
  %s3 = inlined_call_operand.vmem [shape: bf16[32,32], index: 3, kind: input, shape index: {}]
  %s4 = inlined_call_operand.vmem [shape: f32[1,32], index: 4, kind: input, shape index: {}]
  %s5 = inlined_call_operand.vmem [shape: bf16[32,128], index: 5, kind: input, shape index: {}]
  %s6 = inlined_call_operand.vmem [shape: f32[1,128], index: 6, kind: input, shape index: {}]
  %s7 = inlined_call_operand.hbm [shape: f32[304,128], index: 7, kind: output, shape index: {}]
  %s8 = sld [smem:[#allocation0]]
  $region38: #{tpu_custom_call.1} parent=0
    _
  %s10 = ssub.s32 1, %s8
  %s11 = scalar_select 0, %s10, %s8
  $region1: #{tpu_custom_call.1} parent=0
    #allocation2 [shape = 'u8[155648]{0}', space=vmem, size = 0x26000, scoped, tag = 'output window, operand 0, single buffered']
    #allocation3 [shape = 's32[1]{0}', space=sflag, size = 0x4, scoped, tag = 'scoped memory for tpu_custom_call.1']
    %12 = vsyncpa [#allocation3], 0
    // Predicated region
    $region2: #{tpu_custom_call.1} parent=1 // pred_check
      _
    $region3: #{tpu_custom_call.1} parent=1 // pred_check_branch
      %14 = sbr.rel (0) target = $region5
    $region4: #{tpu_custom_call.1} parent=1 // pred_region
      _
    $region5: #{tpu_custom_call.1} parent=1 // pred_fallthru
      _
    // Predicated region
    $region6: #{tpu_custom_call.1} parent=1 // pred_check
      _
    $region7: #{tpu_custom_call.1} parent=1 // pred_check_branch
      %16 = sbr.rel (0) target = $region9
    $region8: #{tpu_custom_call.1} parent=1 // pred_region
      _
    $region9: #{tpu_custom_call.1} parent=1 // pred_fallthru
      _
    // Predicated region
    $region10: #{tpu_custom_call.1} parent=1 // pred_check
      _
    $region11: #{tpu_custom_call.1} parent=1 // pred_check_branch
      %18 = sbr.rel (0) target = $region13
    $region12: #{tpu_custom_call.1} parent=1 // pred_region
      _
    $region13: #{tpu_custom_call.1} parent=1 // pred_fallthru
      _
    // Predicated region
    $region14: #{tpu_custom_call.1} parent=1 // pred_check
      _
    $region15: #{tpu_custom_call.1} parent=1 // pred_check_branch
      %20 = sbr.rel (0) target = $region17
    $region16: #{tpu_custom_call.1} parent=1 // pred_region
      _
    $region17: #{tpu_custom_call.1} parent=1 // pred_fallthru
      _
    // Predicated region
    $region18: #{tpu_custom_call.1} parent=1 // pred_check
      _
    $region19: #{tpu_custom_call.1} parent=1 // pred_check_branch
      %22 = sbr.rel (0) target = $region21
    $region20: #{tpu_custom_call.1} parent=1 // pred_region
      _
    $region21: #{tpu_custom_call.1} parent=1 // pred_fallthru
      _
    // Predicated region
    $region22: #{tpu_custom_call.1} parent=1 // pred_check
      _
    $region23: #{tpu_custom_call.1} parent=1 // pred_check_branch
      %24 = sbr.rel (0) target = $region25
    $region24: #{tpu_custom_call.1} parent=1 // pred_region
      _
    $region25: #{tpu_custom_call.1} parent=1 // pred_fallthru
      _
    // Predicated region
    $region26: #{tpu_custom_call.1} parent=1 // pred_check
      _
    $region27: #{tpu_custom_call.1} parent=1 // pred_check_branch
      %26 = sbr.rel (0) target = $region29
    $region28: #{tpu_custom_call.1} parent=1 // pred_region
      _
    $region29: #{tpu_custom_call.1} parent=1 // pred_fallthru
      _
    %v28 = vld [vmem:[%s0] sm:$0xff]
    %v29 = vld [vmem:[%s0 + $0x8] sm:$0xff]
    %v30 = vld [vmem:[%s0 + $0x10] sm:$0xff]
    %v31 = vld [vmem:[%s0 + $0x18] sm:$0xff]
    %v32 = vld [vmem:[%s0 + $0x20] sm:$0xff]
    %v33 = vld [vmem:[%s0 + $0x28] sm:$0xff]
    %v34 = vld [vmem:[%s0 + $0x30] sm:$0xff]
    %v35 = vld [vmem:[%s0 + $0x38] sm:$0xff]
    %v36 = vld [vmem:[%s0 + $0x40] sm:$0xff]
    %v37 = vld [vmem:[%s0 + $0x48] sm:$0xff]
    %v38 = vld [vmem:[%s0 + $0x50] sm:$0xff]
    %v39 = vld [vmem:[%s0 + $0x58] sm:$0xff]
    %v40 = vld [vmem:[%s0 + $0x60] sm:$0xff]
    %v41 = vld [vmem:[%s0 + $0x68] sm:$0xff]
    %v42 = vld [vmem:[%s0 + $0x70] sm:$0xff]
    %v43 = vld [vmem:[%s0 + $0x78] sm:$0xff]
    %v44 = vld [vmem:[%s0 + $0x80] sm:$0xff]
    %v45 = vld [vmem:[%s0 + $0x88] sm:$0xff]
    %v46 = vld [vmem:[%s0 + $0x90] sm:$0xff]
    %v47 = vld [vmem:[%s0 + $0x98] sm:$0xff]
    %v48 = vld [vmem:[%s0 + $0xa0] sm:$0xff]
    %v49 = vld [vmem:[%s0 + $0xa8] sm:$0xff]
    %v50 = vld [vmem:[%s0 + $0xb0] sm:$0xff]
    %v51 = vld [vmem:[%s0 + $0xb8] sm:$0xff]
    %v52 = vld [vmem:[%s0 + $0xc0] sm:$0xff]
    %v53 = vld [vmem:[%s0 + $0xc8] sm:$0xff]
    %v54 = vld [vmem:[%s0 + $0xd0] sm:$0xff]
    %v55 = vld [vmem:[%s0 + $0xd8] sm:$0xff]
    %v56 = vld [vmem:[%s0 + $0xe0] sm:$0xff]
    %v57 = vld [vmem:[%s0 + $0xe8] sm:$0xff]
    %v58 = vld [vmem:[%s0 + $0xf0] sm:$0xff]
    %v59 = vld [vmem:[%s0 + $0xf8] sm:$0xff]
    %v60 = vld [vmem:[%s0 + $0x100] sm:$0xff]
    %v61 = vld [vmem:[%s0 + $0x108] sm:$0xff]
    %v62 = vld [vmem:[%s0 + $0x110] sm:$0xff]
    %v63 = vld [vmem:[%s0 + $0x118] sm:$0xff]
    %v64 = vld [vmem:[%s0 + $0x120] sm:$0xff]
    %v65 = vld [vmem:[%s0 + $0x128] sm:$0xff]
    %vm66 = vcmp.gt.f32.partialorder %v28, 0.0
    %vm67 = vcmp.gt.f32.partialorder %v29, 0.0
    %vm68 = vcmp.gt.f32.partialorder %v30, 0.0
    %vm69 = vcmp.gt.f32.partialorder %v31, 0.0
    %vm70 = vcmp.gt.f32.partialorder %v32, 0.0
    %vm71 = vcmp.gt.f32.partialorder %v33, 0.0
    %vm72 = vcmp.gt.f32.partialorder %v34, 0.0
    %vm73 = vcmp.gt.f32.partialorder %v35, 0.0
    %vm74 = vcmp.gt.f32.partialorder %v36, 0.0
    %vm75 = vcmp.gt.f32.partialorder %v37, 0.0
    %vm76 = vcmp.gt.f32.partialorder %v38, 0.0
    %vm77 = vcmp.gt.f32.partialorder %v39, 0.0
    %vm78 = vcmp.gt.f32.partialorder %v40, 0.0
    %vm79 = vcmp.gt.f32.partialorder %v41, 0.0
    %vm80 = vcmp.gt.f32.partialorder %v42, 0.0
    %vm81 = vcmp.gt.f32.partialorder %v43, 0.0
    %vm82 = vcmp.gt.f32.partialorder %v44, 0.0
    %vm83 = vcmp.gt.f32.partialorder %v45, 0.0
    %vm84 = vcmp.gt.f32.partialorder %v46, 0.0
    %vm85 = vcmp.gt.f32.partialorder %v47, 0.0
    %vm86 = vcmp.gt.f32.partialorder %v48, 0.0
    %vm87 = vcmp.gt.f32.partialorder %v49, 0.0
    %vm88 = vcmp.gt.f32.partialorder %v50, 0.0
    %vm89 = vcmp.gt.f32.partialorder %v51, 0.0
    %vm90 = vcmp.gt.f32.partialorder %v52, 0.0
    %vm91 = vcmp.gt.f32.partialorder %v53, 0.0
    %vm92 = vcmp.gt.f32.partialorder %v54, 0.0
    %vm93 = vcmp.gt.f32.partialorder %v55, 0.0
    %vm94 = vcmp.gt.f32.partialorder %v56, 0.0
    %vm95 = vcmp.gt.f32.partialorder %v57, 0.0
    %vm96 = vcmp.gt.f32.partialorder %v58, 0.0
    %vm97 = vcmp.gt.f32.partialorder %v59, 0.0
    %vm98 = vcmp.gt.f32.partialorder %v60, 0.0
    %vm99 = vcmp.gt.f32.partialorder %v61, 0.0
    %vm100 = vcmp.gt.f32.partialorder %v62, 0.0
    %vm101 = vcmp.gt.f32.partialorder %v63, 0.0
    %vm102 = vcmp.gt.f32.partialorder %v64, 0.0
    %vm103 = vcmp.gt.f32.partialorder %v65, 0.0
    %v104 = vmul.f32 %v28, 0.01
    %v105 = vmul.f32 %v29, 0.01
    %v106 = vmul.f32 %v30, 0.01
    %v107 = vmul.f32 %v31, 0.01
    %v108 = vmul.f32 %v32, 0.01
    %v109 = vmul.f32 %v33, 0.01
    %v110 = vmul.f32 %v34, 0.01
    %v111 = vmul.f32 %v35, 0.01
    %v112 = vmul.f32 %v36, 0.01
    %v113 = vmul.f32 %v37, 0.01
    %v114 = vmul.f32 %v38, 0.01
    %v115 = vmul.f32 %v39, 0.01
    %v116 = vmul.f32 %v40, 0.01
    %v117 = vmul.f32 %v41, 0.01
    %v118 = vmul.f32 %v42, 0.01
    %v119 = vmul.f32 %v43, 0.01
    %v120 = vmul.f32 %v44, 0.01
    %v121 = vmul.f32 %v45, 0.01
    %v122 = vmul.f32 %v46, 0.01
    %v123 = vmul.f32 %v47, 0.01
    %v124 = vmul.f32 %v48, 0.01
    %v125 = vmul.f32 %v49, 0.01
    %v126 = vmul.f32 %v50, 0.01
    %v127 = vmul.f32 %v51, 0.01
    %v128 = vmul.f32 %v52, 0.01
    %v129 = vmul.f32 %v53, 0.01
    %v130 = vmul.f32 %v54, 0.01
    %v131 = vmul.f32 %v55, 0.01
    %v132 = vmul.f32 %v56, 0.01
    %v133 = vmul.f32 %v57, 0.01
    %v134 = vmul.f32 %v58, 0.01
    %v135 = vmul.f32 %v59, 0.01
    %v136 = vmul.f32 %v60, 0.01
    %v137 = vmul.f32 %v61, 0.01
    %v138 = vmul.f32 %v62, 0.01
    %v139 = vmul.f32 %v63, 0.01
    %v140 = vmul.f32 %v64, 0.01
    %v141 = vmul.f32 %v65, 0.01
    %v142 = vsel %vm66, %v28, %v104
    %v143 = vsel %vm67, %v29, %v105
    %v144 = vsel %vm68, %v30, %v106
    %v145 = vsel %vm69, %v31, %v107
    %v146 = vsel %vm70, %v32, %v108
    %v147 = vsel %vm71, %v33, %v109
    %v148 = vsel %vm72, %v34, %v110
    %v149 = vsel %vm73, %v35, %v111
    %v150 = vsel %vm74, %v36, %v112
    %v151 = vsel %vm75, %v37, %v113
    %v152 = vsel %vm76, %v38, %v114
    %v153 = vsel %vm77, %v39, %v115
    %v154 = vsel %vm78, %v40, %v116
    %v155 = vsel %vm79, %v41, %v117
    %v156 = vsel %vm80, %v42, %v118
    %v157 = vsel %vm81, %v43, %v119
    %v158 = vsel %vm82, %v44, %v120
    %v159 = vsel %vm83, %v45, %v121
    %v160 = vsel %vm84, %v46, %v122
    %v161 = vsel %vm85, %v47, %v123
    %v162 = vsel %vm86, %v48, %v124
    %v163 = vsel %vm87, %v49, %v125
    %v164 = vsel %vm88, %v50, %v126
    %v165 = vsel %vm89, %v51, %v127
    %v166 = vsel %vm90, %v52, %v128
    %v167 = vsel %vm91, %v53, %v129
    %v168 = vsel %vm92, %v54, %v130
    %v169 = vsel %vm93, %v55, %v131
    %v170 = vsel %vm94, %v56, %v132
    %v171 = vsel %vm95, %v57, %v133
    %v172 = vsel %vm96, %v58, %v134
    %v173 = vsel %vm97, %v59, %v135
    %v174 = vsel %vm98, %v60, %v136
    %v175 = vsel %vm99, %v61, %v137
    %v176 = vsel %vm100, %v62, %v138
    %v177 = vsel %vm101, %v63, %v139
    %v178 = vsel %vm102, %v64, %v140
    %v179 = vsel %vm103, %v65, %v141
    %v180 = vpack.c.bf16 %v143, %v142
    %v181 = vpack.c.bf16 %v145, %v144
    %v182 = vpack.c.bf16 %v147, %v146
    %v183 = vpack.c.bf16 %v149, %v148
    %v184 = vpack.c.bf16 %v151, %v150
    %v185 = vpack.c.bf16 %v153, %v152
    %v186 = vpack.c.bf16 %v155, %v154
    %v187 = vpack.c.bf16 %v157, %v156
    %v188 = vpack.c.bf16 %v159, %v158
    %v189 = vpack.c.bf16 %v161, %v160
    %v190 = vpack.c.bf16 %v163, %v162
    %v191 = vpack.c.bf16 %v165, %v164
    %v192 = vpack.c.bf16 %v167, %v166
    %v193 = vpack.c.bf16 %v169, %v168
    %v194 = vpack.c.bf16 %v171, %v170
    %v195 = vpack.c.bf16 %v173, %v172
    %v196 = vpack.c.bf16 %v175, %v174
    %v197 = vpack.c.bf16 %v177, %v176
    %v198 = vpack.c.bf16 %v179, %v178
    %v199 = vld [vmem:[%s1] sm:$0xf]
    %v200 = vld [vmem:[%s1 + $0x4] sm:$0xf]
    %v201 = vld [vmem:[%s2] sm:$0x1]
    %v203 = vlaneseq
    %v204 = vshrl.u32 %v203, 7
    %v205 = vsub.s32 0, %v204
    %v206 = vrot.slane %v201, %v205
    %v210 = vunpack.c.l.b16 %v199
    %v211 = vunpack.c.l.b16 %v200
    %v212 = vpack.c.b16 %v211, %v210
    %vm214 = vcmask 130048
    %v216 = vsel %vm214, %v180, 0
    %v219 = vsel %vm214, %v181, 0
    %v222 = vsel %vm214, %v182, 0
    %v225 = vsel %vm214, %v183, 0
    %v228 = vsel %vm214, %v184, 0
    %v231 = vsel %vm214, %v185, 0
    %v234 = vsel %vm214, %v186, 0
    %v237 = vsel %vm214, %v187, 0
    %v240 = vsel %vm214, %v188, 0
    %v243 = vsel %vm214, %v189, 0
    %v246 = vsel %vm214, %v190, 0
    %v249 = vsel %vm214, %v191, 0
    %v252 = vsel %vm214, %v192, 0
    %v255 = vsel %vm214, %v193, 0
    %v258 = vsel %vm214, %v194, 0
    %v261 = vsel %vm214, %v195, 0
    %v264 = vsel %vm214, %v196, 0
    %v267 = vsel %vm214, %v197, 0
    %v270 = vsel %vm214, %v198, 0
    %272 = vmatprep.subr.bf16.mxu0 0
    %273 = vmatpush1.bf16.msra.mxu0 0
    %274 = vmatprep.subr.bf16.mxu0 0
    %275 = vmatpush1.bf16.msra.mxu0 0
    %276 = vmatprep.subr.bf16.mxu0 0
    %277 = vmatpush1.bf16.msra.mxu0 0
    %278 = vmatprep.subr.bf16.mxu0 0
    %279 = vmatpush1.bf16.msra.mxu0 0
    %280 = vmatprep.subr.bf16.mxu0 0
    %281 = vmatpush1.bf16.msra.mxu0 0
    %282 = vmatprep.subr.bf16.mxu0 0
    %283 = vmatpush1.bf16.msra.mxu0 0
    %284 = vmatprep.subr.bf16.mxu0 0
    %285 = vmatpush1.bf16.msra.mxu0 0
    %286 = vmatprep.subr.bf16.mxu0 0
    %287 = vmatpush1.bf16.msra.mxu0 %v212
    %288 = vmatprep.subr.bf16.mxu0 0
    %289 = vmatpush2.bf16.msra.mxu0 0
    %290 = vmatprep.subr.bf16.mxu0 0
    %291 = vmatpush2.bf16.msra.mxu0 0
    %292 = vmatprep.subr.bf16.mxu0 0
    %293 = vmatpush2.bf16.msra.mxu0 0
    %294 = vmatprep.subr.bf16.mxu0 0
    %295 = vmatpush2.bf16.msra.mxu0 0
    %296 = vmatprep.subr.bf16.mxu0 0
    %297 = vmatpush2.bf16.msra.mxu0 0
    %298 = vmatprep.subr.bf16.mxu0 0
    %299 = vmatpush2.bf16.msra.mxu0 0
    %300 = vmatprep.subr.bf16.mxu0 0
    %301 = vmatpush2.bf16.msra.mxu0 0
    %302 = vmatprep.subr.bf16.mxu0 0
    %303 = vmatpush2.bf16.msra.mxu0 0
    %304 = vmatprep.mubr.bf16.mxu0 0
    %305 = vmatmul.mubr.bf16.gmra.mxu0 %v216
    %v306 = vpop.f32.mrf.mxu0
    %v307 = vadd.f32 %v206, %v306
    %v308 = vpop.f32.mrf.mxu0
    %v309 = vpop.f32.mrf.mxu0
    %v310 = vadd.f32 %v206, %v309
    %v311 = vpop.f32.mrf.mxu0
    %312 = vmatprep.mubr.bf16.mxu0 0
    %313 = vmatmul.mubr.bf16.gmra.mxu0 %v219
    %v314 = vpop.f32.mrf.mxu0
    %v315 = vadd.f32 %v206, %v314
    %v316 = vpop.f32.mrf.mxu0
    %v317 = vpop.f32.mrf.mxu0
    %v318 = vadd.f32 %v206, %v317
    %v319 = vpop.f32.mrf.mxu0
    %320 = vmatprep.mubr.bf16.mxu0 0
    %321 = vmatmul.mubr.bf16.gmra.mxu0 %v222
    %v322 = vpop.f32.mrf.mxu0
    %v323 = vadd.f32 %v206, %v322
    %v324 = vpop.f32.mrf.mxu0
    %v325 = vpop.f32.mrf.mxu0
    %v326 = vadd.f32 %v206, %v325
    %v327 = vpop.f32.mrf.mxu0
    %328 = vmatprep.mubr.bf16.mxu0 0
    %329 = vmatmul.mubr.bf16.gmra.mxu0 %v225
    %v330 = vpop.f32.mrf.mxu0
    %v331 = vadd.f32 %v206, %v330
    %v332 = vpop.f32.mrf.mxu0
    %v333 = vpop.f32.mrf.mxu0
    %v334 = vadd.f32 %v206, %v333
    %v335 = vpop.f32.mrf.mxu0
    %336 = vmatprep.mubr.bf16.mxu0 0
    %337 = vmatmul.mubr.bf16.gmra.mxu0 %v228
    %v338 = vpop.f32.mrf.mxu0
    %v339 = vadd.f32 %v206, %v338
    %v340 = vpop.f32.mrf.mxu0
    %v341 = vpop.f32.mrf.mxu0
    %v342 = vadd.f32 %v206, %v341
    %v343 = vpop.f32.mrf.mxu0
    %344 = vmatprep.mubr.bf16.mxu0 0
    %345 = vmatmul.mubr.bf16.gmra.mxu0 %v231
    %v346 = vpop.f32.mrf.mxu0
    %v347 = vadd.f32 %v206, %v346
    %v348 = vpop.f32.mrf.mxu0
    %v349 = vpop.f32.mrf.mxu0
    %v350 = vadd.f32 %v206, %v349
    %v351 = vpop.f32.mrf.mxu0
    %352 = vmatprep.mubr.bf16.mxu0 0
    %353 = vmatmul.mubr.bf16.gmra.mxu0 %v234
    %v354 = vpop.f32.mrf.mxu0
    %v355 = vadd.f32 %v206, %v354
    %v356 = vpop.f32.mrf.mxu0
    %v357 = vpop.f32.mrf.mxu0
    %v358 = vadd.f32 %v206, %v357
    %v359 = vpop.f32.mrf.mxu0
    %360 = vmatprep.mubr.bf16.mxu0 0
    %361 = vmatmul.mubr.bf16.gmra.mxu0 %v237
    %v362 = vpop.f32.mrf.mxu0
    %v363 = vadd.f32 %v206, %v362
    %v364 = vpop.f32.mrf.mxu0
    %v365 = vpop.f32.mrf.mxu0
    %v366 = vadd.f32 %v206, %v365
    %v367 = vpop.f32.mrf.mxu0
    %368 = vmatprep.mubr.bf16.mxu0 0
    %369 = vmatmul.mubr.bf16.gmra.mxu0 %v240
    %v370 = vpop.f32.mrf.mxu0
    %v371 = vadd.f32 %v206, %v370
    %v372 = vpop.f32.mrf.mxu0
    %v373 = vpop.f32.mrf.mxu0
    %v374 = vadd.f32 %v206, %v373
    %v375 = vpop.f32.mrf.mxu0
    %376 = vmatprep.mubr.bf16.mxu0 0
    %377 = vmatmul.mubr.bf16.gmra.mxu0 %v243
    %v378 = vpop.f32.mrf.mxu0
    %v379 = vadd.f32 %v206, %v378
    %v380 = vpop.f32.mrf.mxu0
    %v381 = vpop.f32.mrf.mxu0
    %v382 = vadd.f32 %v206, %v381
    %v383 = vpop.f32.mrf.mxu0
    %384 = vmatprep.mubr.bf16.mxu0 0
    %385 = vmatmul.mubr.bf16.gmra.mxu0 %v246
    %v386 = vpop.f32.mrf.mxu0
    %v387 = vadd.f32 %v206, %v386
    %v388 = vpop.f32.mrf.mxu0
    %v389 = vpop.f32.mrf.mxu0
    %v390 = vadd.f32 %v206, %v389
    %v391 = vpop.f32.mrf.mxu0
    %392 = vmatprep.mubr.bf16.mxu0 0
    %393 = vmatmul.mubr.bf16.gmra.mxu0 %v249
    %v394 = vpop.f32.mrf.mxu0
    %v395 = vadd.f32 %v206, %v394
    %v396 = vpop.f32.mrf.mxu0
    %v397 = vpop.f32.mrf.mxu0
    %v398 = vadd.f32 %v206, %v397
    %v399 = vpop.f32.mrf.mxu0
    %400 = vmatprep.mubr.bf16.mxu0 0
    %401 = vmatmul.mubr.bf16.gmra.mxu0 %v252
    %v402 = vpop.f32.mrf.mxu0
    %v403 = vadd.f32 %v206, %v402
    %v404 = vpop.f32.mrf.mxu0
    %v405 = vpop.f32.mrf.mxu0
    %v406 = vadd.f32 %v206, %v405
    %v407 = vpop.f32.mrf.mxu0
    %408 = vmatprep.mubr.bf16.mxu0 0
    %409 = vmatmul.mubr.bf16.gmra.mxu0 %v255
    %v410 = vpop.f32.mrf.mxu0
    %v411 = vadd.f32 %v206, %v410
    %v412 = vpop.f32.mrf.mxu0
    %v413 = vpop.f32.mrf.mxu0
    %v414 = vadd.f32 %v206, %v413
    %v415 = vpop.f32.mrf.mxu0
    %416 = vmatprep.mubr.bf16.mxu0 0
    %417 = vmatmul.mubr.bf16.gmra.mxu0 %v258
    %v418 = vpop.f32.mrf.mxu0
    %v419 = vadd.f32 %v206, %v418
    %v420 = vpop.f32.mrf.mxu0
    %v421 = vpop.f32.mrf.mxu0
    %v422 = vadd.f32 %v206, %v421
    %v423 = vpop.f32.mrf.mxu0
    %424 = vmatprep.mubr.bf16.mxu0 0
    %425 = vmatmul.mubr.bf16.gmra.mxu0 %v261
    %v426 = vpop.f32.mrf.mxu0
    %v427 = vadd.f32 %v206, %v426
    %v428 = vpop.f32.mrf.mxu0
    %v429 = vpop.f32.mrf.mxu0
    %v430 = vadd.f32 %v206, %v429
    %v431 = vpop.f32.mrf.mxu0
    %432 = vmatprep.mubr.bf16.mxu0 0
    %433 = vmatmul.mubr.bf16.gmra.mxu0 %v264
    %v434 = vpop.f32.mrf.mxu0
    %v435 = vadd.f32 %v206, %v434
    %v436 = vpop.f32.mrf.mxu0
    %v437 = vpop.f32.mrf.mxu0
    %v438 = vadd.f32 %v206, %v437
    %v439 = vpop.f32.mrf.mxu0
    %440 = vmatprep.mubr.bf16.mxu0 0
    %441 = vmatmul.mubr.bf16.gmra.mxu0 %v267
    %v442 = vpop.f32.mrf.mxu0
    %v443 = vadd.f32 %v206, %v442
    %v444 = vpop.f32.mrf.mxu0
    %v445 = vpop.f32.mrf.mxu0
    %v446 = vadd.f32 %v206, %v445
    %v447 = vpop.f32.mrf.mxu0
    %448 = vmatprep.mubr.bf16.mxu0 0
    %449 = vmatmul.mubr.bf16.gmra.mxu0 %v270
    %v450 = vpop.f32.mrf.mxu0
    %v451 = vadd.f32 %v206, %v450
    %v452 = vpop.f32.mrf.mxu0
    %v453 = vpop.f32.mrf.mxu0
    %v454 = vadd.f32 %v206, %v453
    %v455 = vpop.f32.mrf.mxu0
    %456 = vdwg.mxu0
    %vm457 = vcmp.gt.f32.partialorder %v307, 0.0
    %vm458 = vcmp.gt.f32.partialorder %v310, 0.0
    %vm459 = vcmp.gt.f32.partialorder %v315, 0.0
    %vm460 = vcmp.gt.f32.partialorder %v318, 0.0
    %vm461 = vcmp.gt.f32.partialorder %v323, 0.0
    %vm462 = vcmp.gt.f32.partialorder %v326, 0.0
    %vm463 = vcmp.gt.f32.partialorder %v331, 0.0
    %vm464 = vcmp.gt.f32.partialorder %v334, 0.0
    %vm465 = vcmp.gt.f32.partialorder %v339, 0.0
    %vm466 = vcmp.gt.f32.partialorder %v342, 0.0
    %vm467 = vcmp.gt.f32.partialorder %v347, 0.0
    %vm468 = vcmp.gt.f32.partialorder %v350, 0.0
    %vm469 = vcmp.gt.f32.partialorder %v355, 0.0
    %vm470 = vcmp.gt.f32.partialorder %v358, 0.0
    %vm471 = vcmp.gt.f32.partialorder %v363, 0.0
    %vm472 = vcmp.gt.f32.partialorder %v366, 0.0
    %vm473 = vcmp.gt.f32.partialorder %v371, 0.0
    %vm474 = vcmp.gt.f32.partialorder %v374, 0.0
    %vm475 = vcmp.gt.f32.partialorder %v379, 0.0
    %vm476 = vcmp.gt.f32.partialorder %v382, 0.0
    %vm477 = vcmp.gt.f32.partialorder %v387, 0.0
    %vm478 = vcmp.gt.f32.partialorder %v390, 0.0
    %vm479 = vcmp.gt.f32.partialorder %v395, 0.0
    %vm480 = vcmp.gt.f32.partialorder %v398, 0.0
    %vm481 = vcmp.gt.f32.partialorder %v403, 0.0
    %vm482 = vcmp.gt.f32.partialorder %v406, 0.0
    %vm483 = vcmp.gt.f32.partialorder %v411, 0.0
    %vm484 = vcmp.gt.f32.partialorder %v414, 0.0
    %vm485 = vcmp.gt.f32.partialorder %v419, 0.0
    %vm486 = vcmp.gt.f32.partialorder %v422, 0.0
    %vm487 = vcmp.gt.f32.partialorder %v427, 0.0
    %vm488 = vcmp.gt.f32.partialorder %v430, 0.0
    %vm489 = vcmp.gt.f32.partialorder %v435, 0.0
    %vm490 = vcmp.gt.f32.partialorder %v438, 0.0
    %vm491 = vcmp.gt.f32.partialorder %v443, 0.0
    %vm492 = vcmp.gt.f32.partialorder %v446, 0.0
    %vm493 = vcmp.gt.f32.partialorder %v451, 0.0
    %vm494 = vcmp.gt.f32.partialorder %v454, 0.0
    %v495 = vmul.f32 %v307, 0.01
    %v496 = vmul.f32 %v310, 0.01
    %v497 = vmul.f32 %v315, 0.01
    %v498 = vmul.f32 %v318, 0.01
    %v499 = vmul.f32 %v323, 0.01
    %v500 = vmul.f32 %v326, 0.01
    %v501 = vmul.f32 %v331, 0.01
    %v502 = vmul.f32 %v334, 0.01
    %v503 = vmul.f32 %v339, 0.01
    %v504 = vmul.f32 %v342, 0.01
    %v505 = vmul.f32 %v347, 0.01
    %v506 = vmul.f32 %v350, 0.01
    %v507 = vmul.f32 %v355, 0.01
    %v508 = vmul.f32 %v358, 0.01
    %v509 = vmul.f32 %v363, 0.01
    %v510 = vmul.f32 %v366, 0.01
    %v511 = vmul.f32 %v371, 0.01
    %v512 = vmul.f32 %v374, 0.01
    %v513 = vmul.f32 %v379, 0.01
    %v514 = vmul.f32 %v382, 0.01
    %v515 = vmul.f32 %v387, 0.01
    %v516 = vmul.f32 %v390, 0.01
    %v517 = vmul.f32 %v395, 0.01
    %v518 = vmul.f32 %v398, 0.01
    %v519 = vmul.f32 %v403, 0.01
    %v520 = vmul.f32 %v406, 0.01
    %v521 = vmul.f32 %v411, 0.01
    %v522 = vmul.f32 %v414, 0.01
    %v523 = vmul.f32 %v419, 0.01
    %v524 = vmul.f32 %v422, 0.01
    %v525 = vmul.f32 %v427, 0.01
    %v526 = vmul.f32 %v430, 0.01
    %v527 = vmul.f32 %v435, 0.01
    %v528 = vmul.f32 %v438, 0.01
    %v529 = vmul.f32 %v443, 0.01
    %v530 = vmul.f32 %v446, 0.01
    %v531 = vmul.f32 %v451, 0.01
    %v532 = vmul.f32 %v454, 0.01
    %v533 = vsel %vm457, %v307, %v495
    %v534 = vsel %vm458, %v310, %v496
    %v535 = vsel %vm459, %v315, %v497
    %v536 = vsel %vm460, %v318, %v498
    %v537 = vsel %vm461, %v323, %v499
    %v538 = vsel %vm462, %v326, %v500
    %v539 = vsel %vm463, %v331, %v501
    %v540 = vsel %vm464, %v334, %v502
    %v541 = vsel %vm465, %v339, %v503
    %v542 = vsel %vm466, %v342, %v504
    %v543 = vsel %vm467, %v347, %v505
    %v544 = vsel %vm468, %v350, %v506
    %v545 = vsel %vm469, %v355, %v507
    %v546 = vsel %vm470, %v358, %v508
    %v547 = vsel %vm471, %v363, %v509
    %v548 = vsel %vm472, %v366, %v510
    %v549 = vsel %vm473, %v371, %v511
    %v550 = vsel %vm474, %v374, %v512
    %v551 = vsel %vm475, %v379, %v513
    %v552 = vsel %vm476, %v382, %v514
    %v553 = vsel %vm477, %v387, %v515
    %v554 = vsel %vm478, %v390, %v516
    %v555 = vsel %vm479, %v395, %v517
    %v556 = vsel %vm480, %v398, %v518
    %v557 = vsel %vm481, %v403, %v519
    %v558 = vsel %vm482, %v406, %v520
    %v559 = vsel %vm483, %v411, %v521
    %v560 = vsel %vm484, %v414, %v522
    %v561 = vsel %vm485, %v419, %v523
    %v562 = vsel %vm486, %v422, %v524
    %v563 = vsel %vm487, %v427, %v525
    %v564 = vsel %vm488, %v430, %v526
    %v565 = vsel %vm489, %v435, %v527
    %v566 = vsel %vm490, %v438, %v528
    %v567 = vsel %vm491, %v443, %v529
    %v568 = vsel %vm492, %v446, %v530
    %v569 = vsel %vm493, %v451, %v531
    %v570 = vsel %vm494, %v454, %v532
    %v571 = vpack.c.bf16 %v534, %v533
    %v572 = vpack.c.bf16 %v536, %v535
    %v573 = vpack.c.bf16 %v538, %v537
    %v574 = vpack.c.bf16 %v540, %v539
    %v575 = vpack.c.bf16 %v542, %v541
    %v576 = vpack.c.bf16 %v544, %v543
    %v577 = vpack.c.bf16 %v546, %v545
    %v578 = vpack.c.bf16 %v548, %v547
    %v579 = vpack.c.bf16 %v550, %v549
    %v580 = vpack.c.bf16 %v552, %v551
    %v581 = vpack.c.bf16 %v554, %v553
    %v582 = vpack.c.bf16 %v556, %v555
    %v583 = vpack.c.bf16 %v558, %v557
    %v584 = vpack.c.bf16 %v560, %v559
    %v585 = vpack.c.bf16 %v562, %v561
    %v586 = vpack.c.bf16 %v564, %v563
    %v587 = vpack.c.bf16 %v566, %v565
    %v588 = vpack.c.bf16 %v568, %v567
    %v589 = vpack.c.bf16 %v570, %v569
    %v590 = vld [vmem:[%s3] sm:$0xf]
    %v591 = vld [vmem:[%s3 + $0x4] sm:$0xf]
    %v592 = vld [vmem:[%s3 + $0x8] sm:$0xf]
    %v593 = vld [vmem:[%s3 + $0xc] sm:$0xf]
    %v594 = vld [vmem:[%s4] sm:$0x1]
    %v596 = vlaneseq
    %v597 = vshrl.u32 %v596, 7
    %v598 = vsub.s32 0, %v597
    %v599 = vrot.slane %v594, %v598
    %v605 = vunpack.c.l.b16 %v590
    %v606 = vunpack.c.l.b16 %v591
    %v607 = vunpack.c.l.b16 %v592
    %v608 = vunpack.c.l.b16 %v593
    %v609 = vpack.c.b16 %v606, %v605
    %v610 = vpack.c.b16 %v608, %v607
    %vm613 = vcmask 261120
    %v615 = vsel %vm613, %v571, 0
    %v618 = vsel %vm613, %v572, 0
    %v621 = vsel %vm613, %v573, 0
    %v624 = vsel %vm613, %v574, 0
    %v627 = vsel %vm613, %v575, 0
    %v630 = vsel %vm613, %v576, 0
    %v633 = vsel %vm613, %v577, 0
    %v636 = vsel %vm613, %v578, 0
    %v639 = vsel %vm613, %v579, 0
    %v642 = vsel %vm613, %v580, 0
    %v645 = vsel %vm613, %v581, 0
    %v648 = vsel %vm613, %v582, 0
    %v651 = vsel %vm613, %v583, 0
    %v654 = vsel %vm613, %v584, 0
    %v657 = vsel %vm613, %v585, 0
    %v660 = vsel %vm613, %v586, 0
    %v663 = vsel %vm613, %v587, 0
    %v666 = vsel %vm613, %v588, 0
    %v669 = vsel %vm613, %v589, 0
    %671 = vmatprep.subr.bf16.mxu0 0
    %672 = vmatpush1.bf16.msra.mxu0 0
    %673 = vmatprep.subr.bf16.mxu0 0
    %674 = vmatpush1.bf16.msra.mxu0 0
    %675 = vmatprep.subr.bf16.mxu0 0
    %676 = vmatpush1.bf16.msra.mxu0 0
    %677 = vmatprep.subr.bf16.mxu0 0
    %678 = vmatpush1.bf16.msra.mxu0 0
    %679 = vmatprep.subr.bf16.mxu0 0
    %680 = vmatpush1.bf16.msra.mxu0 0
    %681 = vmatprep.subr.bf16.mxu0 0
    %682 = vmatpush1.bf16.msra.mxu0 0
    %683 = vmatprep.subr.bf16.mxu0 0
    %684 = vmatpush1.bf16.msra.mxu0 %v610
    %685 = vmatprep.subr.bf16.mxu0 0
    %686 = vmatpush1.bf16.msra.mxu0 %v609
    %687 = vmatprep.subr.bf16.mxu0 0
    %688 = vmatpush2.bf16.msra.mxu0 0
    %689 = vmatprep.subr.bf16.mxu0 0
    %690 = vmatpush2.bf16.msra.mxu0 0
    %691 = vmatprep.subr.bf16.mxu0 0
    %692 = vmatpush2.bf16.msra.mxu0 0
    %693 = vmatprep.subr.bf16.mxu0 0
    %694 = vmatpush2.bf16.msra.mxu0 0
    %695 = vmatprep.subr.bf16.mxu0 0
    %696 = vmatpush2.bf16.msra.mxu0 0
    %697 = vmatprep.subr.bf16.mxu0 0
    %698 = vmatpush2.bf16.msra.mxu0 0
    %699 = vmatprep.subr.bf16.mxu0 0
    %700 = vmatpush2.bf16.msra.mxu0 0
    %701 = vmatprep.subr.bf16.mxu0 0
    %702 = vmatpush2.bf16.msra.mxu0 0
    %703 = vmatprep.mubr.bf16.mxu0 0
    %704 = vmatmul.mubr.bf16.gmra.mxu0 %v615
    %v705 = vpop.f32.mrf.mxu0
    %v706 = vadd.f32 %v599, %v705
    %v707 = vpop.f32.mrf.mxu0
    %v708 = vpop.f32.mrf.mxu0
    %v709 = vadd.f32 %v599, %v708
    %v710 = vpop.f32.mrf.mxu0
    %711 = vmatprep.mubr.bf16.mxu0 0
    %712 = vmatmul.mubr.bf16.gmra.mxu0 %v618
    %v713 = vpop.f32.mrf.mxu0
    %v714 = vadd.f32 %v599, %v713
    %v715 = vpop.f32.mrf.mxu0
    %v716 = vpop.f32.mrf.mxu0
    %v717 = vadd.f32 %v599, %v716
    %v718 = vpop.f32.mrf.mxu0
    %719 = vmatprep.mubr.bf16.mxu0 0
    %720 = vmatmul.mubr.bf16.gmra.mxu0 %v621
    %v721 = vpop.f32.mrf.mxu0
    %v722 = vadd.f32 %v599, %v721
    %v723 = vpop.f32.mrf.mxu0
    %v724 = vpop.f32.mrf.mxu0
    %v725 = vadd.f32 %v599, %v724
    %v726 = vpop.f32.mrf.mxu0
    %727 = vmatprep.mubr.bf16.mxu0 0
    %728 = vmatmul.mubr.bf16.gmra.mxu0 %v624
    %v729 = vpop.f32.mrf.mxu0
    %v730 = vadd.f32 %v599, %v729
    %v731 = vpop.f32.mrf.mxu0
    %v732 = vpop.f32.mrf.mxu0
    %v733 = vadd.f32 %v599, %v732
    %v734 = vpop.f32.mrf.mxu0
    %735 = vmatprep.mubr.bf16.mxu0 0
    %736 = vmatmul.mubr.bf16.gmra.mxu0 %v627
    %v737 = vpop.f32.mrf.mxu0
    %v738 = vadd.f32 %v599, %v737
    %v739 = vpop.f32.mrf.mxu0
    %v740 = vpop.f32.mrf.mxu0
    %v741 = vadd.f32 %v599, %v740
    %v742 = vpop.f32.mrf.mxu0
    %743 = vmatprep.mubr.bf16.mxu0 0
    %744 = vmatmul.mubr.bf16.gmra.mxu0 %v630
    %v745 = vpop.f32.mrf.mxu0
    %v746 = vadd.f32 %v599, %v745
    %v747 = vpop.f32.mrf.mxu0
    %v748 = vpop.f32.mrf.mxu0
    %v749 = vadd.f32 %v599, %v748
    %v750 = vpop.f32.mrf.mxu0
    %751 = vmatprep.mubr.bf16.mxu0 0
    %752 = vmatmul.mubr.bf16.gmra.mxu0 %v633
    %v753 = vpop.f32.mrf.mxu0
    %v754 = vadd.f32 %v599, %v753
    %v755 = vpop.f32.mrf.mxu0
    %v756 = vpop.f32.mrf.mxu0
    %v757 = vadd.f32 %v599, %v756
    %v758 = vpop.f32.mrf.mxu0
    %759 = vmatprep.mubr.bf16.mxu0 0
    %760 = vmatmul.mubr.bf16.gmra.mxu0 %v636
    %v761 = vpop.f32.mrf.mxu0
    %v762 = vadd.f32 %v599, %v761
    %v763 = vpop.f32.mrf.mxu0
    %v764 = vpop.f32.mrf.mxu0
    %v765 = vadd.f32 %v599, %v764
    %v766 = vpop.f32.mrf.mxu0
    %767 = vmatprep.mubr.bf16.mxu0 0
    %768 = vmatmul.mubr.bf16.gmra.mxu0 %v639
    %v769 = vpop.f32.mrf.mxu0
    %v770 = vadd.f32 %v599, %v769
    %v771 = vpop.f32.mrf.mxu0
    %v772 = vpop.f32.mrf.mxu0
    %v773 = vadd.f32 %v599, %v772
    %v774 = vpop.f32.mrf.mxu0
    %775 = vmatprep.mubr.bf16.mxu0 0
    %776 = vmatmul.mubr.bf16.gmra.mxu0 %v642
    %v777 = vpop.f32.mrf.mxu0
    %v778 = vadd.f32 %v599, %v777
    %v779 = vpop.f32.mrf.mxu0
    %v780 = vpop.f32.mrf.mxu0
    %v781 = vadd.f32 %v599, %v780
    %v782 = vpop.f32.mrf.mxu0
    %783 = vmatprep.mubr.bf16.mxu0 0
    %784 = vmatmul.mubr.bf16.gmra.mxu0 %v645
    %v785 = vpop.f32.mrf.mxu0
    %v786 = vadd.f32 %v599, %v785
    %v787 = vpop.f32.mrf.mxu0
    %v788 = vpop.f32.mrf.mxu0
    %v789 = vadd.f32 %v599, %v788
    %v790 = vpop.f32.mrf.mxu0
    %791 = vmatprep.mubr.bf16.mxu0 0
    %792 = vmatmul.mubr.bf16.gmra.mxu0 %v648
    %v793 = vpop.f32.mrf.mxu0
    %v794 = vadd.f32 %v599, %v793
    %v795 = vpop.f32.mrf.mxu0
    %v796 = vpop.f32.mrf.mxu0
    %v797 = vadd.f32 %v599, %v796
    %v798 = vpop.f32.mrf.mxu0
    %799 = vmatprep.mubr.bf16.mxu0 0
    %800 = vmatmul.mubr.bf16.gmra.mxu0 %v651
    %v801 = vpop.f32.mrf.mxu0
    %v802 = vadd.f32 %v599, %v801
    %v803 = vpop.f32.mrf.mxu0
    %v804 = vpop.f32.mrf.mxu0
    %v805 = vadd.f32 %v599, %v804
    %v806 = vpop.f32.mrf.mxu0
    %807 = vmatprep.mubr.bf16.mxu0 0
    %808 = vmatmul.mubr.bf16.gmra.mxu0 %v654
    %v809 = vpop.f32.mrf.mxu0
    %v810 = vadd.f32 %v599, %v809
    %v811 = vpop.f32.mrf.mxu0
    %v812 = vpop.f32.mrf.mxu0
    %v813 = vadd.f32 %v599, %v812
    %v814 = vpop.f32.mrf.mxu0
    %815 = vmatprep.mubr.bf16.mxu0 0
    %816 = vmatmul.mubr.bf16.gmra.mxu0 %v657
    %v817 = vpop.f32.mrf.mxu0
    %v818 = vadd.f32 %v599, %v817
    %v819 = vpop.f32.mrf.mxu0
    %v820 = vpop.f32.mrf.mxu0
    %v821 = vadd.f32 %v599, %v820
    %v822 = vpop.f32.mrf.mxu0
    %823 = vmatprep.mubr.bf16.mxu0 0
    %824 = vmatmul.mubr.bf16.gmra.mxu0 %v660
    %v825 = vpop.f32.mrf.mxu0
    %v826 = vadd.f32 %v599, %v825
    %v827 = vpop.f32.mrf.mxu0
    %v828 = vpop.f32.mrf.mxu0
    %v829 = vadd.f32 %v599, %v828
    %v830 = vpop.f32.mrf.mxu0
    %831 = vmatprep.mubr.bf16.mxu0 0
    %832 = vmatmul.mubr.bf16.gmra.mxu0 %v663
    %v833 = vpop.f32.mrf.mxu0
    %v834 = vadd.f32 %v599, %v833
    %v835 = vpop.f32.mrf.mxu0
    %v836 = vpop.f32.mrf.mxu0
    %v837 = vadd.f32 %v599, %v836
    %v838 = vpop.f32.mrf.mxu0
    %839 = vmatprep.mubr.bf16.mxu0 0
    %840 = vmatmul.mubr.bf16.gmra.mxu0 %v666
    %v841 = vpop.f32.mrf.mxu0
    %v842 = vadd.f32 %v599, %v841
    %v843 = vpop.f32.mrf.mxu0
    %v844 = vpop.f32.mrf.mxu0
    %v845 = vadd.f32 %v599, %v844
    %v846 = vpop.f32.mrf.mxu0
    %847 = vmatprep.mubr.bf16.mxu0 0
    %848 = vmatmul.mubr.bf16.gmra.mxu0 %v669
    %v849 = vpop.f32.mrf.mxu0
    %v850 = vadd.f32 %v599, %v849
    %v851 = vpop.f32.mrf.mxu0
    %v852 = vpop.f32.mrf.mxu0
    %v853 = vadd.f32 %v599, %v852
    %v854 = vpop.f32.mrf.mxu0
    %855 = vdwg.mxu0
    %vm856 = vcmp.gt.f32.partialorder %v706, 0.0
    %vm857 = vcmp.gt.f32.partialorder %v709, 0.0
    %vm858 = vcmp.gt.f32.partialorder %v714, 0.0
    %vm859 = vcmp.gt.f32.partialorder %v717, 0.0
    %vm860 = vcmp.gt.f32.partialorder %v722, 0.0
    %vm861 = vcmp.gt.f32.partialorder %v725, 0.0
    %vm862 = vcmp.gt.f32.partialorder %v730, 0.0
    %vm863 = vcmp.gt.f32.partialorder %v733, 0.0
    %vm864 = vcmp.gt.f32.partialorder %v738, 0.0
    %vm865 = vcmp.gt.f32.partialorder %v741, 0.0
    %vm866 = vcmp.gt.f32.partialorder %v746, 0.0
    %vm867 = vcmp.gt.f32.partialorder %v749, 0.0
    %vm868 = vcmp.gt.f32.partialorder %v754, 0.0
    %vm869 = vcmp.gt.f32.partialorder %v757, 0.0
    %vm870 = vcmp.gt.f32.partialorder %v762, 0.0
    %vm871 = vcmp.gt.f32.partialorder %v765, 0.0
    %vm872 = vcmp.gt.f32.partialorder %v770, 0.0
    %vm873 = vcmp.gt.f32.partialorder %v773, 0.0
    %vm874 = vcmp.gt.f32.partialorder %v778, 0.0
    %vm875 = vcmp.gt.f32.partialorder %v781, 0.0
    %vm876 = vcmp.gt.f32.partialorder %v786, 0.0
    %vm877 = vcmp.gt.f32.partialorder %v789, 0.0
    %vm878 = vcmp.gt.f32.partialorder %v794, 0.0
    %vm879 = vcmp.gt.f32.partialorder %v797, 0.0
    %vm880 = vcmp.gt.f32.partialorder %v802, 0.0
    %vm881 = vcmp.gt.f32.partialorder %v805, 0.0
    %vm882 = vcmp.gt.f32.partialorder %v810, 0.0
    %vm883 = vcmp.gt.f32.partialorder %v813, 0.0
    %vm884 = vcmp.gt.f32.partialorder %v818, 0.0
    %vm885 = vcmp.gt.f32.partialorder %v821, 0.0
    %vm886 = vcmp.gt.f32.partialorder %v826, 0.0
    %vm887 = vcmp.gt.f32.partialorder %v829, 0.0
    %vm888 = vcmp.gt.f32.partialorder %v834, 0.0
    %vm889 = vcmp.gt.f32.partialorder %v837, 0.0
    %vm890 = vcmp.gt.f32.partialorder %v842, 0.0
    %vm891 = vcmp.gt.f32.partialorder %v845, 0.0
    %vm892 = vcmp.gt.f32.partialorder %v850, 0.0
    %vm893 = vcmp.gt.f32.partialorder %v853, 0.0
    %v894 = vmul.f32 %v706, 0.01
    %v895 = vmul.f32 %v709, 0.01
    %v896 = vmul.f32 %v714, 0.01
    %v897 = vmul.f32 %v717, 0.01
    %v898 = vmul.f32 %v722, 0.01
    %v899 = vmul.f32 %v725, 0.01
    %v900 = vmul.f32 %v730, 0.01
    %v901 = vmul.f32 %v733, 0.01
    %v902 = vmul.f32 %v738, 0.01
    %v903 = vmul.f32 %v741, 0.01
    %v904 = vmul.f32 %v746, 0.01
    %v905 = vmul.f32 %v749, 0.01
    %v906 = vmul.f32 %v754, 0.01
    %v907 = vmul.f32 %v757, 0.01
    %v908 = vmul.f32 %v762, 0.01
    %v909 = vmul.f32 %v765, 0.01
    %v910 = vmul.f32 %v770, 0.01
    %v911 = vmul.f32 %v773, 0.01
    %v912 = vmul.f32 %v778, 0.01
    %v913 = vmul.f32 %v781, 0.01
    %v914 = vmul.f32 %v786, 0.01
    %v915 = vmul.f32 %v789, 0.01
    %v916 = vmul.f32 %v794, 0.01
    %v917 = vmul.f32 %v797, 0.01
    %v918 = vmul.f32 %v802, 0.01
    %v919 = vmul.f32 %v805, 0.01
    %v920 = vmul.f32 %v810, 0.01
    %v921 = vmul.f32 %v813, 0.01
    %v922 = vmul.f32 %v818, 0.01
    %v923 = vmul.f32 %v821, 0.01
    %v924 = vmul.f32 %v826, 0.01
    %v925 = vmul.f32 %v829, 0.01
    %v926 = vmul.f32 %v834, 0.01
    %v927 = vmul.f32 %v837, 0.01
    %v928 = vmul.f32 %v842, 0.01
    %v929 = vmul.f32 %v845, 0.01
    %v930 = vmul.f32 %v850, 0.01
    %v931 = vmul.f32 %v853, 0.01
    %v932 = vsel %vm856, %v706, %v894
    %v933 = vsel %vm857, %v709, %v895
    %v934 = vsel %vm858, %v714, %v896
    %v935 = vsel %vm859, %v717, %v897
    %v936 = vsel %vm860, %v722, %v898
    %v937 = vsel %vm861, %v725, %v899
    %v938 = vsel %vm862, %v730, %v900
    %v939 = vsel %vm863, %v733, %v901
    %v940 = vsel %vm864, %v738, %v902
    %v941 = vsel %vm865, %v741, %v903
    %v942 = vsel %vm866, %v746, %v904
    %v943 = vsel %vm867, %v749, %v905
    %v944 = vsel %vm868, %v754, %v906
    %v945 = vsel %vm869, %v757, %v907
    %v946 = vsel %vm870, %v762, %v908
    %v947 = vsel %vm871, %v765, %v909
    %v948 = vsel %vm872, %v770, %v910
    %v949 = vsel %vm873, %v773, %v911
    %v950 = vsel %vm874, %v778, %v912
    %v951 = vsel %vm875, %v781, %v913
    %v952 = vsel %vm876, %v786, %v914
    %v953 = vsel %vm877, %v789, %v915
    %v954 = vsel %vm878, %v794, %v916
    %v955 = vsel %vm879, %v797, %v917
    %v956 = vsel %vm880, %v802, %v918
    %v957 = vsel %vm881, %v805, %v919
    %v958 = vsel %vm882, %v810, %v920
    %v959 = vsel %vm883, %v813, %v921
    %v960 = vsel %vm884, %v818, %v922
    %v961 = vsel %vm885, %v821, %v923
    %v962 = vsel %vm886, %v826, %v924
    %v963 = vsel %vm887, %v829, %v925
    %v964 = vsel %vm888, %v834, %v926
    %v965 = vsel %vm889, %v837, %v927
    %v966 = vsel %vm890, %v842, %v928
    %v967 = vsel %vm891, %v845, %v929
    %v968 = vsel %vm892, %v850, %v930
    %v969 = vsel %vm893, %v853, %v931
    %v970 = vpack.c.bf16 %v933, %v932
    %v971 = vpack.c.bf16 %v935, %v934
    %v972 = vpack.c.bf16 %v937, %v936
    %v973 = vpack.c.bf16 %v939, %v938
    %v974 = vpack.c.bf16 %v941, %v940
    %v975 = vpack.c.bf16 %v943, %v942
    %v976 = vpack.c.bf16 %v945, %v944
    %v977 = vpack.c.bf16 %v947, %v946
    %v978 = vpack.c.bf16 %v949, %v948
    %v979 = vpack.c.bf16 %v951, %v950
    %v980 = vpack.c.bf16 %v953, %v952
    %v981 = vpack.c.bf16 %v955, %v954
    %v982 = vpack.c.bf16 %v957, %v956
    %v983 = vpack.c.bf16 %v959, %v958
    %v984 = vpack.c.bf16 %v961, %v960
    %v985 = vpack.c.bf16 %v963, %v962
    %v986 = vpack.c.bf16 %v965, %v964
    %v987 = vpack.c.bf16 %v967, %v966
    %v988 = vpack.c.bf16 %v969, %v968
    %v989 = vld [vmem:[%s5] sm:$0xf]
    %v990 = vld [vmem:[%s5 + $0x4] sm:$0xf]
    %v991 = vld [vmem:[%s5 + $0x8] sm:$0xf]
    %v992 = vld [vmem:[%s5 + $0xc] sm:$0xf]
    %v993 = vld [vmem:[%s6] sm:$0x1]
    %v995 = vlaneseq
    %v996 = vshrl.u32 %v995, 7
    %v997 = vsub.s32 0, %v996
    %v998 = vrot.slane %v993, %v997
    %v1004 = vunpack.c.l.b16 %v989
    %v1005 = vunpack.c.l.b16 %v990
    %v1006 = vunpack.c.l.b16 %v991
    %v1007 = vunpack.c.l.b16 %v992
    %v1008 = vpack.c.b16 %v1005, %v1004
    %v1009 = vpack.c.b16 %v1007, %v1006
    %v1013 = vsel %vm613, %v970, 0
    %v1016 = vsel %vm613, %v971, 0
    %v1019 = vsel %vm613, %v972, 0
    %v1022 = vsel %vm613, %v973, 0
    %v1025 = vsel %vm613, %v974, 0
    %v1028 = vsel %vm613, %v975, 0
    %v1031 = vsel %vm613, %v976, 0
    %v1034 = vsel %vm613, %v977, 0
    %v1037 = vsel %vm613, %v978, 0
    %v1040 = vsel %vm613, %v979, 0
    %v1043 = vsel %vm613, %v980, 0
    %v1046 = vsel %vm613, %v981, 0
    %v1049 = vsel %vm613, %v982, 0
    %v1052 = vsel %vm613, %v983, 0
    %v1055 = vsel %vm613, %v984, 0
    %v1058 = vsel %vm613, %v985, 0
    %v1061 = vsel %vm613, %v986, 0
    %v1064 = vsel %vm613, %v987, 0
    %v1067 = vsel %vm613, %v988, 0
    %1069 = vmatprep.subr.bf16.mxu0 0
    %1070 = vmatpush1.bf16.msra.mxu0 0
    %1071 = vmatprep.subr.bf16.mxu0 0
    %1072 = vmatpush1.bf16.msra.mxu0 0
    %1073 = vmatprep.subr.bf16.mxu0 0
    %1074 = vmatpush1.bf16.msra.mxu0 0
    %1075 = vmatprep.subr.bf16.mxu0 0
    %1076 = vmatpush1.bf16.msra.mxu0 0
    %1077 = vmatprep.subr.bf16.mxu0 0
    %1078 = vmatpush1.bf16.msra.mxu0 0
    %1079 = vmatprep.subr.bf16.mxu0 0
    %1080 = vmatpush1.bf16.msra.mxu0 0
    %1081 = vmatprep.subr.bf16.mxu0 0
    %1082 = vmatpush1.bf16.msra.mxu0 %v1009
    %1083 = vmatprep.subr.bf16.mxu0 0
    %1084 = vmatpush1.bf16.msra.mxu0 %v1008
    %1085 = vmatprep.subr.bf16.mxu0 0
    %1086 = vmatpush2.bf16.msra.mxu0 0
    %1087 = vmatprep.subr.bf16.mxu0 0
    %1088 = vmatpush2.bf16.msra.mxu0 0
    %1089 = vmatprep.subr.bf16.mxu0 0
    %1090 = vmatpush2.bf16.msra.mxu0 0
    %1091 = vmatprep.subr.bf16.mxu0 0
    %1092 = vmatpush2.bf16.msra.mxu0 0
    %1093 = vmatprep.subr.bf16.mxu0 0
    %1094 = vmatpush2.bf16.msra.mxu0 0
    %1095 = vmatprep.subr.bf16.mxu0 0
    %1096 = vmatpush2.bf16.msra.mxu0 0
    %1097 = vmatprep.subr.bf16.mxu0 0
    %1098 = vmatpush2.bf16.msra.mxu0 0
    %1099 = vmatprep.subr.bf16.mxu0 0
    %1100 = vmatpush2.bf16.msra.mxu0 0
    %1101 = vmatprep.mubr.bf16.mxu0 0
    %1102 = vmatmul.mubr.bf16.gmra.mxu0 %v1013
    %v1103 = vpop.f32.mrf.mxu0
    %v1104 = vadd.f32 %v998, %v1103
    %v1105 = vpop.f32.mrf.mxu0
    %v1106 = vpop.f32.mrf.mxu0
    %v1107 = vadd.f32 %v998, %v1106
    %v1108 = vpop.f32.mrf.mxu0
    %1109 = vmatprep.mubr.bf16.mxu0 0
    %1110 = vmatmul.mubr.bf16.gmra.mxu0 %v1016
    %v1111 = vpop.f32.mrf.mxu0
    %v1112 = vadd.f32 %v998, %v1111
    %v1113 = vpop.f32.mrf.mxu0
    %v1114 = vpop.f32.mrf.mxu0
    %v1115 = vadd.f32 %v998, %v1114
    %v1116 = vpop.f32.mrf.mxu0
    %1117 = vmatprep.mubr.bf16.mxu0 0
    %1118 = vmatmul.mubr.bf16.gmra.mxu0 %v1019
    %v1119 = vpop.f32.mrf.mxu0
    %v1120 = vadd.f32 %v998, %v1119
    %v1121 = vpop.f32.mrf.mxu0
    %v1122 = vpop.f32.mrf.mxu0
    %v1123 = vadd.f32 %v998, %v1122
    %v1124 = vpop.f32.mrf.mxu0
    %1125 = vmatprep.mubr.bf16.mxu0 0
    %1126 = vmatmul.mubr.bf16.gmra.mxu0 %v1022
    %v1127 = vpop.f32.mrf.mxu0
    %v1128 = vadd.f32 %v998, %v1127
    %v1129 = vpop.f32.mrf.mxu0
    %v1130 = vpop.f32.mrf.mxu0
    %v1131 = vadd.f32 %v998, %v1130
    %v1132 = vpop.f32.mrf.mxu0
    %1133 = vmatprep.mubr.bf16.mxu0 0
    %1134 = vmatmul.mubr.bf16.gmra.mxu0 %v1025
    %v1135 = vpop.f32.mrf.mxu0
    %v1136 = vadd.f32 %v998, %v1135
    %v1137 = vpop.f32.mrf.mxu0
    %v1138 = vpop.f32.mrf.mxu0
    %v1139 = vadd.f32 %v998, %v1138
    %v1140 = vpop.f32.mrf.mxu0
    %1141 = vmatprep.mubr.bf16.mxu0 0
    %1142 = vmatmul.mubr.bf16.gmra.mxu0 %v1028
    %v1143 = vpop.f32.mrf.mxu0
    %v1144 = vadd.f32 %v998, %v1143
    %v1145 = vpop.f32.mrf.mxu0
    %v1146 = vpop.f32.mrf.mxu0
    %v1147 = vadd.f32 %v998, %v1146
    %v1148 = vpop.f32.mrf.mxu0
    %1149 = vmatprep.mubr.bf16.mxu0 0
    %1150 = vmatmul.mubr.bf16.gmra.mxu0 %v1031
    %v1151 = vpop.f32.mrf.mxu0
    %v1152 = vadd.f32 %v998, %v1151
    %v1153 = vpop.f32.mrf.mxu0
    %v1154 = vpop.f32.mrf.mxu0
    %v1155 = vadd.f32 %v998, %v1154
    %v1156 = vpop.f32.mrf.mxu0
    %1157 = vmatprep.mubr.bf16.mxu0 0
    %1158 = vmatmul.mubr.bf16.gmra.mxu0 %v1034
    %v1159 = vpop.f32.mrf.mxu0
    %v1160 = vadd.f32 %v998, %v1159
    %v1161 = vpop.f32.mrf.mxu0
    %v1162 = vpop.f32.mrf.mxu0
    %v1163 = vadd.f32 %v998, %v1162
    %v1164 = vpop.f32.mrf.mxu0
    %1165 = vmatprep.mubr.bf16.mxu0 0
    %1166 = vmatmul.mubr.bf16.gmra.mxu0 %v1037
    %v1167 = vpop.f32.mrf.mxu0
    %v1168 = vadd.f32 %v998, %v1167
    %v1169 = vpop.f32.mrf.mxu0
    %v1170 = vpop.f32.mrf.mxu0
    %v1171 = vadd.f32 %v998, %v1170
    %v1172 = vpop.f32.mrf.mxu0
    %1173 = vmatprep.mubr.bf16.mxu0 0
    %1174 = vmatmul.mubr.bf16.gmra.mxu0 %v1040
    %v1175 = vpop.f32.mrf.mxu0
    %v1176 = vadd.f32 %v998, %v1175
    %v1177 = vpop.f32.mrf.mxu0
    %v1178 = vpop.f32.mrf.mxu0
    %v1179 = vadd.f32 %v998, %v1178
    %v1180 = vpop.f32.mrf.mxu0
    %1181 = vmatprep.mubr.bf16.mxu0 0
    %1182 = vmatmul.mubr.bf16.gmra.mxu0 %v1043
    %v1183 = vpop.f32.mrf.mxu0
    %v1184 = vadd.f32 %v998, %v1183
    %v1185 = vpop.f32.mrf.mxu0
    %v1186 = vpop.f32.mrf.mxu0
    %v1187 = vadd.f32 %v998, %v1186
    %v1188 = vpop.f32.mrf.mxu0
    %1189 = vmatprep.mubr.bf16.mxu0 0
    %1190 = vmatmul.mubr.bf16.gmra.mxu0 %v1046
    %v1191 = vpop.f32.mrf.mxu0
    %v1192 = vadd.f32 %v998, %v1191
    %v1193 = vpop.f32.mrf.mxu0
    %v1194 = vpop.f32.mrf.mxu0
    %v1195 = vadd.f32 %v998, %v1194
    %v1196 = vpop.f32.mrf.mxu0
    %1197 = vmatprep.mubr.bf16.mxu0 0
    %1198 = vmatmul.mubr.bf16.gmra.mxu0 %v1049
    %v1199 = vpop.f32.mrf.mxu0
    %v1200 = vadd.f32 %v998, %v1199
    %v1201 = vpop.f32.mrf.mxu0
    %v1202 = vpop.f32.mrf.mxu0
    %v1203 = vadd.f32 %v998, %v1202
    %v1204 = vpop.f32.mrf.mxu0
    %1205 = vmatprep.mubr.bf16.mxu0 0
    %1206 = vmatmul.mubr.bf16.gmra.mxu0 %v1052
    %v1207 = vpop.f32.mrf.mxu0
    %v1208 = vadd.f32 %v998, %v1207
    %v1209 = vpop.f32.mrf.mxu0
    %v1210 = vpop.f32.mrf.mxu0
    %v1211 = vadd.f32 %v998, %v1210
    %v1212 = vpop.f32.mrf.mxu0
    %1213 = vmatprep.mubr.bf16.mxu0 0
    %1214 = vmatmul.mubr.bf16.gmra.mxu0 %v1055
    %v1215 = vpop.f32.mrf.mxu0
    %v1216 = vadd.f32 %v998, %v1215
    %v1217 = vpop.f32.mrf.mxu0
    %v1218 = vpop.f32.mrf.mxu0
    %v1219 = vadd.f32 %v998, %v1218
    %v1220 = vpop.f32.mrf.mxu0
    %1221 = vmatprep.mubr.bf16.mxu0 0
    %1222 = vmatmul.mubr.bf16.gmra.mxu0 %v1058
    %v1223 = vpop.f32.mrf.mxu0
    %v1224 = vadd.f32 %v998, %v1223
    %v1225 = vpop.f32.mrf.mxu0
    %v1226 = vpop.f32.mrf.mxu0
    %v1227 = vadd.f32 %v998, %v1226
    %v1228 = vpop.f32.mrf.mxu0
    %1229 = vmatprep.mubr.bf16.mxu0 0
    %1230 = vmatmul.mubr.bf16.gmra.mxu0 %v1061
    %v1231 = vpop.f32.mrf.mxu0
    %v1232 = vadd.f32 %v998, %v1231
    %v1233 = vpop.f32.mrf.mxu0
    %v1234 = vpop.f32.mrf.mxu0
    %v1235 = vadd.f32 %v998, %v1234
    %v1236 = vpop.f32.mrf.mxu0
    %1237 = vmatprep.mubr.bf16.mxu0 0
    %1238 = vmatmul.mubr.bf16.gmra.mxu0 %v1064
    %v1239 = vpop.f32.mrf.mxu0
    %v1240 = vadd.f32 %v998, %v1239
    %v1241 = vpop.f32.mrf.mxu0
    %v1242 = vpop.f32.mrf.mxu0
    %v1243 = vadd.f32 %v998, %v1242
    %v1244 = vpop.f32.mrf.mxu0
    %1245 = vmatprep.mubr.bf16.mxu0 0
    %1246 = vmatmul.mubr.bf16.gmra.mxu0 %v1067
    %v1247 = vpop.f32.mrf.mxu0
    %v1248 = vadd.f32 %v998, %v1247
    %v1249 = vpop.f32.mrf.mxu0
    %v1250 = vpop.f32.mrf.mxu0
    %v1251 = vadd.f32 %v998, %v1250
    %v1252 = vpop.f32.mrf.mxu0
    %1253 = vdwg.mxu0
    %1254 = vmax.xlane.f32.xlu0 %v1104
    %v1255 = vpop.xlane.xlu0 %1254
    %1256 = vmax.xlane.f32.xlu0 %v1107
    %v1257 = vpop.xlane.xlu0 %1256
    %1258 = vmax.xlane.f32.xlu0 %v1112
    %v1259 = vpop.xlane.xlu0 %1258
    %1260 = vmax.xlane.f32.xlu0 %v1115
    %v1261 = vpop.xlane.xlu0 %1260
    %1262 = vmax.xlane.f32.xlu0 %v1120
    %v1263 = vpop.xlane.xlu0 %1262
    %1264 = vmax.xlane.f32.xlu0 %v1123
    %v1265 = vpop.xlane.xlu0 %1264
    %1266 = vmax.xlane.f32.xlu0 %v1128
    %v1267 = vpop.xlane.xlu0 %1266
    %1268 = vmax.xlane.f32.xlu0 %v1131
    %v1269 = vpop.xlane.xlu0 %1268
    %1270 = vmax.xlane.f32.xlu0 %v1136
    %v1271 = vpop.xlane.xlu0 %1270
    %1272 = vmax.xlane.f32.xlu0 %v1139
    %v1273 = vpop.xlane.xlu0 %1272
    %1274 = vmax.xlane.f32.xlu0 %v1144
    %v1275 = vpop.xlane.xlu0 %1274
    %1276 = vmax.xlane.f32.xlu0 %v1147
    %v1277 = vpop.xlane.xlu0 %1276
    %1278 = vmax.xlane.f32.xlu0 %v1152
    %v1279 = vpop.xlane.xlu0 %1278
    %1280 = vmax.xlane.f32.xlu0 %v1155
    %v1281 = vpop.xlane.xlu0 %1280
    %1282 = vmax.xlane.f32.xlu0 %v1160
    %v1283 = vpop.xlane.xlu0 %1282
    %1284 = vmax.xlane.f32.xlu0 %v1163
    %v1285 = vpop.xlane.xlu0 %1284
    %1286 = vmax.xlane.f32.xlu0 %v1168
    %v1287 = vpop.xlane.xlu0 %1286
    %1288 = vmax.xlane.f32.xlu0 %v1171
    %v1289 = vpop.xlane.xlu0 %1288
    %1290 = vmax.xlane.f32.xlu0 %v1176
    %v1291 = vpop.xlane.xlu0 %1290
    %1292 = vmax.xlane.f32.xlu0 %v1179
    %v1293 = vpop.xlane.xlu0 %1292
    %1294 = vmax.xlane.f32.xlu0 %v1184
    %v1295 = vpop.xlane.xlu0 %1294
    %1296 = vmax.xlane.f32.xlu0 %v1187
    %v1297 = vpop.xlane.xlu0 %1296
    %1298 = vmax.xlane.f32.xlu0 %v1192
    %v1299 = vpop.xlane.xlu0 %1298
    %1300 = vmax.xlane.f32.xlu0 %v1195
    %v1301 = vpop.xlane.xlu0 %1300
    %1302 = vmax.xlane.f32.xlu0 %v1200
    %v1303 = vpop.xlane.xlu0 %1302
    %1304 = vmax.xlane.f32.xlu0 %v1203
    %v1305 = vpop.xlane.xlu0 %1304
    %1306 = vmax.xlane.f32.xlu0 %v1208
    %v1307 = vpop.xlane.xlu0 %1306
    %1308 = vmax.xlane.f32.xlu0 %v1211
    %v1309 = vpop.xlane.xlu0 %1308
    %1310 = vmax.xlane.f32.xlu0 %v1216
    %v1311 = vpop.xlane.xlu0 %1310
    %1312 = vmax.xlane.f32.xlu0 %v1219
    %v1313 = vpop.xlane.xlu0 %1312
    %1314 = vmax.xlane.f32.xlu0 %v1224
    %v1315 = vpop.xlane.xlu0 %1314
    %1316 = vmax.xlane.f32.xlu0 %v1227
    %v1317 = vpop.xlane.xlu0 %1316
    %1318 = vmax.xlane.f32.xlu0 %v1232
    %v1319 = vpop.xlane.xlu0 %1318
    %1320 = vmax.xlane.f32.xlu0 %v1235
    %v1321 = vpop.xlane.xlu0 %1320
    %1322 = vmax.xlane.f32.xlu0 %v1240
    %v1323 = vpop.xlane.xlu0 %1322
    %1324 = vmax.xlane.f32.xlu0 %v1243
    %v1325 = vpop.xlane.xlu0 %1324
    %1326 = vmax.xlane.f32.xlu0 %v1248
    %v1327 = vpop.xlane.xlu0 %1326
    %1328 = vmax.xlane.f32.xlu0 %v1251
    %v1329 = vpop.xlane.xlu0 %1328
    %v1330 = vsub.f32 %v1104, %v1255
    %v1331 = vsub.f32 %v1107, %v1257
    %v1332 = vsub.f32 %v1112, %v1259
    %v1333 = vsub.f32 %v1115, %v1261
    %v1334 = vsub.f32 %v1120, %v1263
    %v1335 = vsub.f32 %v1123, %v1265
    %v1336 = vsub.f32 %v1128, %v1267
    %v1337 = vsub.f32 %v1131, %v1269
    %v1338 = vsub.f32 %v1136, %v1271
    %v1339 = vsub.f32 %v1139, %v1273
    %v1340 = vsub.f32 %v1144, %v1275
    %v1341 = vsub.f32 %v1147, %v1277
    %v1342 = vsub.f32 %v1152, %v1279
    %v1343 = vsub.f32 %v1155, %v1281
    %v1344 = vsub.f32 %v1160, %v1283
    %v1345 = vsub.f32 %v1163, %v1285
    %v1346 = vsub.f32 %v1168, %v1287
    %v1347 = vsub.f32 %v1171, %v1289
    %v1348 = vsub.f32 %v1176, %v1291
    %v1349 = vsub.f32 %v1179, %v1293
    %v1350 = vsub.f32 %v1184, %v1295
    %v1351 = vsub.f32 %v1187, %v1297
    %v1352 = vsub.f32 %v1192, %v1299
    %v1353 = vsub.f32 %v1195, %v1301
    %v1354 = vsub.f32 %v1200, %v1303
    %v1355 = vsub.f32 %v1203, %v1305
    %v1356 = vsub.f32 %v1208, %v1307
    %v1357 = vsub.f32 %v1211, %v1309
    %v1358 = vsub.f32 %v1216, %v1311
    %v1359 = vsub.f32 %v1219, %v1313
    %v1360 = vsub.f32 %v1224, %v1315
    %v1361 = vsub.f32 %v1227, %v1317
    %v1362 = vsub.f32 %v1232, %v1319
    %v1363 = vsub.f32 %v1235, %v1321
    %v1364 = vsub.f32 %v1240, %v1323
    %v1365 = vsub.f32 %v1243, %v1325
    %v1366 = vsub.f32 %v1248, %v1327
    %v1367 = vsub.f32 %v1251, %v1329
    %v1368 = vmul.f32 %v1330, 1.442695
    %v1369 = vpow.pop %v1368
    %v1370 = vmul.f32 %v1331, 1.442695
    %v1371 = vpow.pop %v1370
    %v1372 = vmul.f32 %v1332, 1.442695
    %v1373 = vpow.pop %v1372
    %v1374 = vmul.f32 %v1333, 1.442695
    %v1375 = vpow.pop %v1374
    %v1376 = vmul.f32 %v1334, 1.442695
    %v1377 = vpow.pop %v1376
    %v1378 = vmul.f32 %v1335, 1.442695
    %v1379 = vpow.pop %v1378
    %v1380 = vmul.f32 %v1336, 1.442695
    %v1381 = vpow.pop %v1380
    %v1382 = vmul.f32 %v1337, 1.442695
    %v1383 = vpow.pop %v1382
    %v1384 = vmul.f32 %v1338, 1.442695
    %v1385 = vpow.pop %v1384
    %v1386 = vmul.f32 %v1339, 1.442695
    %v1387 = vpow.pop %v1386
    %v1388 = vmul.f32 %v1340, 1.442695
    %v1389 = vpow.pop %v1388
    %v1390 = vmul.f32 %v1341, 1.442695
    %v1391 = vpow.pop %v1390
    %v1392 = vmul.f32 %v1342, 1.442695
    %v1393 = vpow.pop %v1392
    %v1394 = vmul.f32 %v1343, 1.442695
    %v1395 = vpow.pop %v1394
    %v1396 = vmul.f32 %v1344, 1.442695
    %v1397 = vpow.pop %v1396
    %v1398 = vmul.f32 %v1345, 1.442695
    %v1399 = vpow.pop %v1398
    %v1400 = vmul.f32 %v1346, 1.442695
    %v1401 = vpow.pop %v1400
    %v1402 = vmul.f32 %v1347, 1.442695
    %v1403 = vpow.pop %v1402
    %v1404 = vmul.f32 %v1348, 1.442695
    %v1405 = vpow.pop %v1404
    %v1406 = vmul.f32 %v1349, 1.442695
    %v1407 = vpow.pop %v1406
    %v1408 = vmul.f32 %v1350, 1.442695
    %v1409 = vpow.pop %v1408
    %v1410 = vmul.f32 %v1351, 1.442695
    %v1411 = vpow.pop %v1410
    %v1412 = vmul.f32 %v1352, 1.442695
    %v1413 = vpow.pop %v1412
    %v1414 = vmul.f32 %v1353, 1.442695
    %v1415 = vpow.pop %v1414
    %v1416 = vmul.f32 %v1354, 1.442695
    %v1417 = vpow.pop %v1416
    %v1418 = vmul.f32 %v1355, 1.442695
    %v1419 = vpow.pop %v1418
    %v1420 = vmul.f32 %v1356, 1.442695
    %v1421 = vpow.pop %v1420
    %v1422 = vmul.f32 %v1357, 1.442695
    %v1423 = vpow.pop %v1422
    %v1424 = vmul.f32 %v1358, 1.442695
    %v1425 = vpow.pop %v1424
    %v1426 = vmul.f32 %v1359, 1.442695
    %v1427 = vpow.pop %v1426
    %v1428 = vmul.f32 %v1360, 1.442695
    %v1429 = vpow.pop %v1428
    %v1430 = vmul.f32 %v1361, 1.442695
    %v1431 = vpow.pop %v1430
    %v1432 = vmul.f32 %v1362, 1.442695
    %v1433 = vpow.pop %v1432
    %v1434 = vmul.f32 %v1363, 1.442695
    %v1435 = vpow.pop %v1434
    %v1436 = vmul.f32 %v1364, 1.442695
    %v1437 = vpow.pop %v1436
    %v1438 = vmul.f32 %v1365, 1.442695
    %v1439 = vpow.pop %v1438
    %v1440 = vmul.f32 %v1366, 1.442695
    %v1441 = vpow.pop %v1440
    %v1442 = vmul.f32 %v1367, 1.442695
    %v1443 = vpow.pop %v1442
    %1444 = vadd.xlane.f32.xlu0 %v1369
    %v1445 = vpop.xlane.xlu0 %1444
    %1446 = vadd.xlane.f32.xlu0 %v1371
    %v1447 = vpop.xlane.xlu0 %1446
    %1448 = vadd.xlane.f32.xlu0 %v1373
    %v1449 = vpop.xlane.xlu0 %1448
    %1450 = vadd.xlane.f32.xlu0 %v1375
    %v1451 = vpop.xlane.xlu0 %1450
    %1452 = vadd.xlane.f32.xlu0 %v1377
    %v1453 = vpop.xlane.xlu0 %1452
    %1454 = vadd.xlane.f32.xlu0 %v1379
    %v1455 = vpop.xlane.xlu0 %1454
    %1456 = vadd.xlane.f32.xlu0 %v1381
    %v1457 = vpop.xlane.xlu0 %1456
    %1458 = vadd.xlane.f32.xlu0 %v1383
    %v1459 = vpop.xlane.xlu0 %1458
    %1460 = vadd.xlane.f32.xlu0 %v1385
    %v1461 = vpop.xlane.xlu0 %1460
    %1462 = vadd.xlane.f32.xlu0 %v1387
    %v1463 = vpop.xlane.xlu0 %1462
    %1464 = vadd.xlane.f32.xlu0 %v1389
    %v1465 = vpop.xlane.xlu0 %1464
    %1466 = vadd.xlane.f32.xlu0 %v1391
    %v1467 = vpop.xlane.xlu0 %1466
    %1468 = vadd.xlane.f32.xlu0 %v1393
    %v1469 = vpop.xlane.xlu0 %1468
    %1470 = vadd.xlane.f32.xlu0 %v1395
    %v1471 = vpop.xlane.xlu0 %1470
    %1472 = vadd.xlane.f32.xlu0 %v1397
    %v1473 = vpop.xlane.xlu0 %1472
    %1474 = vadd.xlane.f32.xlu0 %v1399
    %v1475 = vpop.xlane.xlu0 %1474
    %1476 = vadd.xlane.f32.xlu0 %v1401
    %v1477 = vpop.xlane.xlu0 %1476
    %1478 = vadd.xlane.f32.xlu0 %v1403
    %v1479 = vpop.xlane.xlu0 %1478
    %1480 = vadd.xlane.f32.xlu0 %v1405
    %v1481 = vpop.xlane.xlu0 %1480
    %1482 = vadd.xlane.f32.xlu0 %v1407
    %v1483 = vpop.xlane.xlu0 %1482
    %1484 = vadd.xlane.f32.xlu0 %v1409
    %v1485 = vpop.xlane.xlu0 %1484
    %1486 = vadd.xlane.f32.xlu0 %v1411
    %v1487 = vpop.xlane.xlu0 %1486
    %1488 = vadd.xlane.f32.xlu0 %v1413
    %v1489 = vpop.xlane.xlu0 %1488
    %1490 = vadd.xlane.f32.xlu0 %v1415
    %v1491 = vpop.xlane.xlu0 %1490
    %1492 = vadd.xlane.f32.xlu0 %v1417
    %v1493 = vpop.xlane.xlu0 %1492
    %1494 = vadd.xlane.f32.xlu0 %v1419
    %v1495 = vpop.xlane.xlu0 %1494
    %1496 = vadd.xlane.f32.xlu0 %v1421
    %v1497 = vpop.xlane.xlu0 %1496
    %1498 = vadd.xlane.f32.xlu0 %v1423
    %v1499 = vpop.xlane.xlu0 %1498
    %1500 = vadd.xlane.f32.xlu0 %v1425
    %v1501 = vpop.xlane.xlu0 %1500
    %1502 = vadd.xlane.f32.xlu0 %v1427
    %v1503 = vpop.xlane.xlu0 %1502
    %1504 = vadd.xlane.f32.xlu0 %v1429
    %v1505 = vpop.xlane.xlu0 %1504
    %1506 = vadd.xlane.f32.xlu0 %v1431
    %v1507 = vpop.xlane.xlu0 %1506
    %1508 = vadd.xlane.f32.xlu0 %v1433
    %v1509 = vpop.xlane.xlu0 %1508
    %1510 = vadd.xlane.f32.xlu0 %v1435
    %v1511 = vpop.xlane.xlu0 %1510
    %1512 = vadd.xlane.f32.xlu0 %v1437
    %v1513 = vpop.xlane.xlu0 %1512
    %1514 = vadd.xlane.f32.xlu0 %v1439
    %v1515 = vpop.xlane.xlu0 %1514
    %1516 = vadd.xlane.f32.xlu0 %v1441
    %v1517 = vpop.xlane.xlu0 %1516
    %1518 = vadd.xlane.f32.xlu0 %v1443
    %v1519 = vpop.xlane.xlu0 %1518
    %v1520 = vrcp.pop %v1445
    %v1521 = vrcp.pop %v1447
    %v1522 = vrcp.pop %v1449
    %v1523 = vrcp.pop %v1451
    %v1524 = vrcp.pop %v1453
    %v1525 = vrcp.pop %v1455
    %v1526 = vrcp.pop %v1457
    %v1527 = vrcp.pop %v1459
    %v1528 = vrcp.pop %v1461
    %v1529 = vrcp.pop %v1463
    %v1530 = vrcp.pop %v1465
    %v1531 = vrcp.pop %v1467
    %v1532 = vrcp.pop %v1469
    %v1533 = vrcp.pop %v1471
    %v1534 = vrcp.pop %v1473
    %v1535 = vrcp.pop %v1475
    %v1536 = vrcp.pop %v1477
    %v1537 = vrcp.pop %v1479
    %v1538 = vrcp.pop %v1481
    %v1539 = vrcp.pop %v1483
    %v1540 = vrcp.pop %v1485
    %v1541 = vrcp.pop %v1487
    %v1542 = vrcp.pop %v1489
    %v1543 = vrcp.pop %v1491
    %v1544 = vrcp.pop %v1493
    %v1545 = vrcp.pop %v1495
    %v1546 = vrcp.pop %v1497
    %v1547 = vrcp.pop %v1499
    %v1548 = vrcp.pop %v1501
    %v1549 = vrcp.pop %v1503
    %v1550 = vrcp.pop %v1505
    %v1551 = vrcp.pop %v1507
    %v1552 = vrcp.pop %v1509
    %v1553 = vrcp.pop %v1511
    %v1554 = vrcp.pop %v1513
    %v1555 = vrcp.pop %v1515
    %v1556 = vrcp.pop %v1517
    %v1557 = vrcp.pop %v1519
    %v1558 = vmul.f32 %v1369, %v1520
    %v1559 = vmul.f32 %v1371, %v1521
    %v1560 = vmul.f32 %v1373, %v1522
    %v1561 = vmul.f32 %v1375, %v1523
    %v1562 = vmul.f32 %v1377, %v1524
    %v1563 = vmul.f32 %v1379, %v1525
    %v1564 = vmul.f32 %v1381, %v1526
    %v1565 = vmul.f32 %v1383, %v1527
    %v1566 = vmul.f32 %v1385, %v1528
    %v1567 = vmul.f32 %v1387, %v1529
    %v1568 = vmul.f32 %v1389, %v1530
    %v1569 = vmul.f32 %v1391, %v1531
    %v1570 = vmul.f32 %v1393, %v1532
    %v1571 = vmul.f32 %v1395, %v1533
    %v1572 = vmul.f32 %v1397, %v1534
    %v1573 = vmul.f32 %v1399, %v1535
    %v1574 = vmul.f32 %v1401, %v1536
    %v1575 = vmul.f32 %v1403, %v1537
    %v1576 = vmul.f32 %v1405, %v1538
    %v1577 = vmul.f32 %v1407, %v1539
    %v1578 = vmul.f32 %v1409, %v1540
    %v1579 = vmul.f32 %v1411, %v1541
    %v1580 = vmul.f32 %v1413, %v1542
    %v1581 = vmul.f32 %v1415, %v1543
    %v1582 = vmul.f32 %v1417, %v1544
    %v1583 = vmul.f32 %v1419, %v1545
    %v1584 = vmul.f32 %v1421, %v1546
    %v1585 = vmul.f32 %v1423, %v1547
    %v1586 = vmul.f32 %v1425, %v1548
    %v1587 = vmul.f32 %v1427, %v1549
    %v1588 = vmul.f32 %v1429, %v1550
    %v1589 = vmul.f32 %v1431, %v1551
    %v1590 = vmul.f32 %v1433, %v1552
    %v1591 = vmul.f32 %v1435, %v1553
    %v1592 = vmul.f32 %v1437, %v1554
    %v1593 = vmul.f32 %v1439, %v1555
    %v1594 = vmul.f32 %v1441, %v1556
    %v1595 = vmul.f32 %v1443, %v1557
    %1596 = vst [vmem:[#allocation2] sm:$0xff] %v1558
    %1597 = vst [vmem:[#allocation2 + $0x8] sm:$0xff] %v1559
    %1598 = vst [vmem:[#allocation2 + $0x10] sm:$0xff] %v1560
    %1599 = vst [vmem:[#allocation2 + $0x18] sm:$0xff] %v1561
    %1600 = vst [vmem:[#allocation2 + $0x20] sm:$0xff] %v1562
    %1601 = vst [vmem:[#allocation2 + $0x28] sm:$0xff] %v1563
    %1602 = vst [vmem:[#allocation2 + $0x30] sm:$0xff] %v1564
    %1603 = vst [vmem:[#allocation2 + $0x38] sm:$0xff] %v1565
    %1604 = vst [vmem:[#allocation2 + $0x40] sm:$0xff] %v1566
    %1605 = vst [vmem:[#allocation2 + $0x48] sm:$0xff] %v1567
    %1606 = vst [vmem:[#allocation2 + $0x50] sm:$0xff] %v1568
    %1607 = vst [vmem:[#allocation2 + $0x58] sm:$0xff] %v1569
    %1608 = vst [vmem:[#allocation2 + $0x60] sm:$0xff] %v1570
    %1609 = vst [vmem:[#allocation2 + $0x68] sm:$0xff] %v1571
    %1610 = vst [vmem:[#allocation2 + $0x70] sm:$0xff] %v1572
    %1611 = vst [vmem:[#allocation2 + $0x78] sm:$0xff] %v1573
    %1612 = vst [vmem:[#allocation2 + $0x80] sm:$0xff] %v1574
    %1613 = vst [vmem:[#allocation2 + $0x88] sm:$0xff] %v1575
    %1614 = vst [vmem:[#allocation2 + $0x90] sm:$0xff] %v1576
    %1615 = vst [vmem:[#allocation2 + $0x98] sm:$0xff] %v1577
    %1616 = vst [vmem:[#allocation2 + $0xa0] sm:$0xff] %v1578
    %1617 = vst [vmem:[#allocation2 + $0xa8] sm:$0xff] %v1579
    %1618 = vst [vmem:[#allocation2 + $0xb0] sm:$0xff] %v1580
    %1619 = vst [vmem:[#allocation2 + $0xb8] sm:$0xff] %v1581
    %1620 = vst [vmem:[#allocation2 + $0xc0] sm:$0xff] %v1582
    %1621 = vst [vmem:[#allocation2 + $0xc8] sm:$0xff] %v1583
    %1622 = vst [vmem:[#allocation2 + $0xd0] sm:$0xff] %v1584
    %1623 = vst [vmem:[#allocation2 + $0xd8] sm:$0xff] %v1585
    %1624 = vst [vmem:[#allocation2 + $0xe0] sm:$0xff] %v1586
    %1625 = vst [vmem:[#allocation2 + $0xe8] sm:$0xff] %v1587
    %1626 = vst [vmem:[#allocation2 + $0xf0] sm:$0xff] %v1588
    %1627 = vst [vmem:[#allocation2 + $0xf8] sm:$0xff] %v1589
    %1628 = vst [vmem:[#allocation2 + $0x100] sm:$0xff] %v1590
    %1629 = vst [vmem:[#allocation2 + $0x108] sm:$0xff] %v1591
    %1630 = vst [vmem:[#allocation2 + $0x110] sm:$0xff] %v1592
    %1631 = vst [vmem:[#allocation2 + $0x118] sm:$0xff] %v1593
    %1632 = vst [vmem:[#allocation2 + $0x120] sm:$0xff] %v1594
    %1633 = vst [vmem:[#allocation2 + $0x128] sm:$0xff] %v1595
    // Predicated region
    $region30: #{tpu_custom_call.1} parent=1 // pred_check
      _
    $region31: #{tpu_custom_call.1} parent=1 // pred_check_branch
      %1635 = sbr.rel (0) target = $region33
    $region32: #{tpu_custom_call.1} parent=1 // pred_region
      %s1637 = ssub.s32 4864, 4864
      %1638 = vsyncadd [#allocation3], %s1637
      %s1639 = sshll.u32 [#allocation2], 4
      %s1640 = int_to_ptr.vmem [resolvable:$true] %s1639
      %1645 = dma.vmem_to_hbm [thread:$0]  %s1640, 4864, %s7, [#allocation3], 128, 128, 8
    $region33: #{tpu_custom_call.1} parent=1 // pred_fallthru
      _
    // Predicated region
    $region34: #{tpu_custom_call.1} parent=1 // pred_check
      _
    $region35: #{tpu_custom_call.1} parent=1 // pred_check_branch
      %1647 = sbr.rel (0) target = $region37
    $region36: #{tpu_custom_call.1} parent=1 // pred_region
      %1648 = dma.done [#allocation3], 4864
    $region37: #{tpu_custom_call.1} parent=1 // pred_fallthru
      _
    %1649 = vsyncpa [#allocation3], 1

</llo_original>
